<compile_context>
chip_gen: v6e
topology: v6e:2x2x1
jax: 0.10.0
libtpu: 0.0.40
codegen_flags: <defaults>
</compile_context>

<pallas_src>
import math

import jax
import jax.numpy as jnp
import numpy as np
from jax.experimental import pallas as pl
from jax.experimental.pallas import tpu as pltpu

D_MODEL = 64
D_FF = 4 * D_MODEL          # 256
NUM_HEADS = 4
NUM_LAYERS = 2
NUM_CLASSES = 2
OUT_PAD = 128               # lane-dense classifier output width
LN_EPS = 1e-5
BLK_MAX = 1024              # max batch rows per grid step

# vector-slab layout: one 256-wide zero-padded row per small vector.
ROWS_PER_LAYER = 5                           # b_attn, ln1_w, ln1_b, b1, b2
LN2_ROW = NUM_LAYERS * ROWS_PER_LAYER        # last layer's ln2_w, ln2_b
BC_ROW = LN2_ROW + 2                         # folded classifier bias (128 wide)
VEC_ROWS = BC_ROW + 1                        # 13
VEC_ROWS_PAD = -(-VEC_ROWS // 8) * 8         # 16


def _round_up(n, m):
    return -(-n // m) * m


def _ln_stats(h):
    mu = jnp.mean(h, axis=-1, keepdims=True)
    d = h - mu
    var = jnp.mean(d * d, axis=-1, keepdims=True)
    return d, jax.lax.rsqrt(var + LN_EPS)


def _layernorm_affine(h, w, b):
    d, r = _ln_stats(h)
    return d * (r * w) + b


def _layernorm_plain(h):
    # affine (gamma/beta) folded into the following matmul at pack time
    d, r = _ln_stats(h)
    return d * r


def _gelu_exact(x):
    # PyTorch activation='gelu' default: exact erf formulation.
    return 0.5 * x * (1.0 + jax.lax.erf(x * (1.0 / math.sqrt(2.0))))


def transformer_classifier_kernel(x_ref, attn_w_ref, w1_ref, w2_ref,
                                  wc_ref, vec_ref, out_ref):
    h = x_ref[...]                                      # (BLK, 64)

    for l in range(NUM_LAYERS):
        base = l * ROWS_PER_LAYER
        # --- self-attention sublayer (seq_len == 1): Wv@Wo, the residual (+I)
        # and the preceding layer's LN2 affine are all folded into attn_w /
        # b_attn at pack time; dropout is identity in eval mode. ---
        t = jnp.dot(h, attn_w_ref[l], preferred_element_type=jnp.float32)
        t = t + vec_ref[base + 0, :D_MODEL]
        h = _layernorm_affine(t, vec_ref[base + 1, :D_MODEL],
                              vec_ref[base + 2, :D_MODEL])

        # --- feed-forward sublayer ---
        ff = jnp.dot(h, w1_ref[l], preferred_element_type=jnp.float32)
        ff = _gelu_exact(ff + vec_ref[base + 3, :])     # full 256-wide bias row
        ff = jnp.dot(ff, w2_ref[l], preferred_element_type=jnp.float32)
        ff = ff + vec_ref[base + 4, :D_MODEL]
        h = h + ff
        if l == NUM_LAYERS - 1:
            h = _layernorm_affine(h, vec_ref[LN2_ROW + 0, :D_MODEL],
                                  vec_ref[LN2_ROW + 1, :D_MODEL])
        else:
            h = _layernorm_plain(h)     # affine folded into next layer's attn_w

    # --- classifier head: LN affine folded into wc/bc; lane-dense output ---
    h = _layernorm_plain(h)
    out_ref[...] = (jnp.dot(h, wc_ref[...], preferred_element_type=jnp.float32)
                    + vec_ref[BC_ROW, :OUT_PAD])


def _pad_row(v, width=D_FF):
    v = jnp.asarray(v, jnp.float32).reshape(-1)
    return jnp.pad(v, (0, width - v.shape[0]))


def pack_params(torch_like):
    """Pre-transpose / fold / consolidate PyTorch params into 5 kernel slabs."""
    attn_ws, w1s, w2s, vec_rows = [], [], [], []
    for l in range(NUM_LAYERS):
        p = torch_like[l]
        # Only the V slice of in_proj matters for seq_len == 1; fold Wv @ Wo
        # and the residual identity into one (64,64) matrix.
        wv_t = p["in_proj_w"][2 * D_MODEL:3 * D_MODEL, :].T     # (64,64) in->out
        wo_t = p["out_proj_w"].T                                # (64,64) in->out
        bv = p["in_proj_b"][2 * D_MODEL:3 * D_MODEL]
        a = wv_t @ wo_t + jnp.eye(D_MODEL, dtype=jnp.float32)   # + residual
        b_attn = bv @ wo_t + p["out_proj_b"]
        if l > 0:
            # fold previous layer's LN2 affine: (g*z + beta) @ A + b
            #   = z @ (diag(g) A) + (beta @ A + b)
            g_prev = torch_like[l - 1]["ln2_w"]
            beta_prev = torch_like[l - 1]["ln2_b"]
            b_attn = beta_prev @ a + b_attn
            a = g_prev[:, None] * a
        attn_ws.append(a)
        w1s.append(p["lin1_w"].T)                               # (64, 256)
        w2s.append(p["lin2_w"].T)                               # (256, 64)
        vec_rows += [_pad_row(b_attn),
                     _pad_row(p["ln1_w"]), _pad_row(p["ln1_b"]),
                     _pad_row(p["lin1_b"]), _pad_row(p["lin2_b"])]

    # last layer's LN2 keeps its affine in-kernel (followed by another LN).
    last = torch_like[NUM_LAYERS - 1]
    vec_rows += [_pad_row(last["ln2_w"]), _pad_row(last["ln2_b"])]

    # classifier: fold LN affine into the (lane-dense, 128-padded) linear.
    c = torch_like[-1]
    wc_pad = jnp.zeros((D_MODEL, OUT_PAD), jnp.float32)
    wc_pad = wc_pad.at[:, :NUM_CLASSES].set(c["cls_w"].T)
    cls_b_pad = jnp.zeros((OUT_PAD,), jnp.float32).at[:NUM_CLASSES].set(c["cls_b"])
    bc_fold = c["lnc_b"] @ wc_pad + cls_b_pad
    wc_fold = c["lnc_w"][:, None] * wc_pad
    vec_rows.append(_pad_row(bc_fold))

    vec_slab = jnp.stack(vec_rows)                              # (VEC_ROWS, 256)
    vec_slab = jnp.pad(vec_slab, ((0, VEC_ROWS_PAD - VEC_ROWS), (0, 0)))

    return (jnp.stack(attn_ws), jnp.stack(w1s), jnp.stack(w2s),
            wc_fold, vec_slab)


def init_params(key):
    """Deterministic synthetic parameters: PyTorch-shaped dicts + packed slabs.
    LN weights/biases are non-trivial so the algebraic folds are exercised."""
    torch_like = []
    for _ in range(NUM_LAYERS):
        key, *ks = jax.random.split(key, 13)
        torch_like.append(dict(
            in_proj_w=jax.random.normal(ks[0], (3 * D_MODEL, D_MODEL), jnp.float32) * 0.05,
            in_proj_b=jax.random.normal(ks[1], (3 * D_MODEL,), jnp.float32) * 0.02,
            out_proj_w=jax.random.normal(ks[2], (D_MODEL, D_MODEL), jnp.float32) * 0.05,
            out_proj_b=jax.random.normal(ks[3], (D_MODEL,), jnp.float32) * 0.02,
            lin1_w=jax.random.normal(ks[4], (D_FF, D_MODEL), jnp.float32) * 0.05,
            lin1_b=jax.random.normal(ks[5], (D_FF,), jnp.float32) * 0.02,
            lin2_w=jax.random.normal(ks[6], (D_MODEL, D_FF), jnp.float32) * 0.05,
            lin2_b=jax.random.normal(ks[7], (D_MODEL,), jnp.float32) * 0.02,
            ln1_w=1.0 + 0.1 * jax.random.normal(ks[8], (D_MODEL,), jnp.float32),
            ln1_b=0.05 * jax.random.normal(ks[9], (D_MODEL,), jnp.float32),
            ln2_w=1.0 + 0.1 * jax.random.normal(ks[10], (D_MODEL,), jnp.float32),
            ln2_b=0.05 * jax.random.normal(ks[11], (D_MODEL,), jnp.float32),
        ))

    key, k1, k2, k3, k4 = jax.random.split(key, 5)
    torch_like.append(dict(
        lnc_w=1.0 + 0.1 * jax.random.normal(k3, (D_MODEL,), jnp.float32),
        lnc_b=0.05 * jax.random.normal(k4, (D_MODEL,), jnp.float32),
        cls_w=jax.random.normal(k1, (NUM_CLASSES, D_MODEL), jnp.float32) * 0.05,
        cls_b=jax.random.normal(k2, (NUM_CLASSES,), jnp.float32) * 0.02,
    ))

    packed = pack_params(torch_like)
    return packed, torch_like


def _pick_block(B, blk_max=BLK_MAX):
    # At least 2 grid steps whenever B > 8 so the "parallel" batch axis can
    # shard across both TensorCores on v7x (and the pipeline is non-degenerate).
    half = _round_up(pl.cdiv(B, 2), 8)
    return max(8, min(blk_max, half))


def transformer_classifier_forward(x, packed, blk_max=BLK_MAX):
    B = x.shape[0]
    blk = _pick_block(B, blk_max)
    B_pad = _round_up(B, blk)
    if B_pad != B:
        x = jnp.pad(x, ((0, B_pad - B), (0, 0)))
    grid = (B_pad // blk,)

    attn_w, w1, w2, wc, vecs = packed
    in_specs = [
        pl.BlockSpec((blk, D_MODEL), lambda i: (i, 0)),
        pl.BlockSpec(attn_w.shape, lambda i: (0, 0, 0)),   # VMEM-resident weights
        pl.BlockSpec(w1.shape, lambda i: (0, 0, 0)),
        pl.BlockSpec(w2.shape, lambda i: (0, 0, 0)),
        pl.BlockSpec(wc.shape, lambda i: (0, 0)),
        pl.BlockSpec(vecs.shape, lambda i: (0, 0)),
    ]

    out = pl.pallas_call(
        transformer_classifier_kernel,
        out_shape=jax.ShapeDtypeStruct((B_pad, OUT_PAD), jnp.float32),
        grid_spec=pltpu.PrefetchScalarGridSpec(
            num_scalar_prefetch=0,
            grid=grid,
            in_specs=in_specs,
            out_specs=pl.BlockSpec((blk, OUT_PAD), lambda i: (i, 0)),
        ),
        compiler_params=pltpu.CompilerParams(
            dimension_semantics=("parallel",),
            vmem_limit_bytes=32 * 1024 * 1024),
    )(x, attn_w, w1, w2, wc, vecs)
    return out[:B, :NUM_CLASSES]


def reference_forward(x, torch_like):
    """Pure-JAX reference mirroring PyTorch TransformerEncoderLayer (eval)."""
    B = x.shape[0]
    h = x[:, None, :]                                      # (B, 1, 64) batch_first
    head_dim = D_MODEL // NUM_HEADS
    for l in range(NUM_LAYERS):
        p = torch_like[l]
        qkv = h @ p["in_proj_w"].T + p["in_proj_b"]        # (B, 1, 192)
        q, k, v = jnp.split(qkv, 3, axis=-1)
        q = q.reshape(B, 1, NUM_HEADS, head_dim).transpose(0, 2, 1, 3)
        k = k.reshape(B, 1, NUM_HEADS, head_dim).transpose(0, 2, 1, 3)
        v = v.reshape(B, 1, NUM_HEADS, head_dim).transpose(0, 2, 1, 3)
        scores = (q @ k.transpose(0, 1, 3, 2)) / math.sqrt(head_dim)
        attn = jax.nn.softmax(scores, axis=-1) @ v          # softmax over 1 key == 1
        attn = attn.transpose(0, 2, 1, 3).reshape(B, 1, D_MODEL)
        sa = attn @ p["out_proj_w"].T + p["out_proj_b"]
        h = _layernorm_affine(h + sa, p["ln1_w"], p["ln1_b"])
        ff = h @ p["lin1_w"].T + p["lin1_b"]
        ff = _gelu_exact(ff)
        ff = ff @ p["lin2_w"].T + p["lin2_b"]
        h = _layernorm_affine(h + ff, p["ln2_w"], p["ln2_b"])
    h = h[:, 0, :]
    c = torch_like[-1]
    h = _layernorm_affine(h, c["lnc_w"], c["lnc_b"])
    return h @ c["cls_w"].T + c["cls_b"]


if __name__ == "__main__":
    key = jax.random.PRNGKey(0)
    key, kx, kp = jax.random.split(key, 3)

    B = 12   # not a multiple of 8: exercises padding and the 2-step grid path
    x = jax.random.normal(kx, (B, D_MODEL), jnp.float32)

    packed, torch_like = init_params(kp)

    out = transformer_classifier_forward(x, packed)
    out = jax.block_until_ready(out)

    ref = reference_forward(x, torch_like)
    np.testing.assert_allclose(np.asarray(out), np.asarray(ref),
                               rtol=1e-5, atol=1e-5)
    print("KERNEL_OK")
</pallas_src>

<mosaic_0001>
module attributes {stable_mosaic.version = 11 : i64} {
  func.func @transformer_classifier_kernel(%arg0: i32, %arg1: memref<8x64xf32, #tpu.memory_space<vmem>>, %arg2: memref<2x64x64xf32, #tpu.memory_space<vmem>>, %arg3: memref<2x64x256xf32, #tpu.memory_space<vmem>>, %arg4: memref<2x256x64xf32, #tpu.memory_space<vmem>>, %arg5: memref<64x128xf32, #tpu.memory_space<vmem>>, %arg6: memref<16x256xf32, #tpu.memory_space<vmem>>, %arg7: memref<8x128xf32, #tpu.memory_space<vmem>>) attributes {dimension_semantics = [#tpu.dimension_semantics<parallel>], iteration_bounds = array<i64: 2>, scalar_prefetch = 0 : i64, scratch_operands = 0 : i64, tpu.core_type = #tpu.core_type<tc>, window_params = [{transform_indices = @transform_0, window_bounds = array<i64: 8, 64>}, {pipeline_mode = #tpu.pipeline_mode<synchronous>, transform_indices = @transform_1, window_bounds = array<i64: 2, 64, 64>}, {pipeline_mode = #tpu.pipeline_mode<synchronous>, transform_indices = @transform_2, window_bounds = array<i64: 2, 64, 256>}, {pipeline_mode = #tpu.pipeline_mode<synchronous>, transform_indices = @transform_3, window_bounds = array<i64: 2, 256, 64>}, {pipeline_mode = #tpu.pipeline_mode<synchronous>, transform_indices = @transform_4, window_bounds = array<i64: 64, 128>}, {pipeline_mode = #tpu.pipeline_mode<synchronous>, transform_indices = @transform_5, window_bounds = array<i64: 16, 256>}, {transform_indices = @transform_6, window_bounds = array<i64: 8, 128>}]} {
    %c0 = arith.constant 0 : index
    %c0_0 = arith.constant 0 : index
    %0 = vector.load %arg1[%c0, %c0_0] : memref<8x64xf32, #tpu.memory_space<vmem>>, vector<8x64xf32>
    %c0_1 = arith.constant 0 : index
    %c0_2 = arith.constant 0 : index
    %c0_3 = arith.constant 0 : index
    %1 = vector.load %arg2[%c0_1, %c0_2, %c0_3] : memref<2x64x64xf32, #tpu.memory_space<vmem>>, vector<1x64x64xf32>
    %2 = vector.shape_cast %1 : vector<1x64x64xf32> to vector<64x64xf32>
    %cst = arith.constant dense<0.000000e+00> : vector<8x64xf32>
    %3 = tpu.matmul %0, %2, %cst {dimension_numbers = #tpu.dot_dimension_numbers<[1], [0], [0], [1], [0, 0, 1, 1], [], []>} : vector<8x64xf32>, vector<64x64xf32>, vector<8x64xf32> -> vector<8x64xf32>
    %c0_4 = arith.constant 0 : index
    %c0_5 = arith.constant 0 : index
    %4 = vector.load %arg6[%c0_4, %c0_5] : memref<16x256xf32, #tpu.memory_space<vmem>>, vector<1x64xf32>
    %5 = vector.shape_cast %4 : vector<1x64xf32> to vector<64xf32>
    %6 = vector.shape_cast %5 : vector<64xf32> to vector<1x64xf32>
    %7 = vector.broadcast %6 : vector<1x64xf32> to vector<8x64xf32>
    %8 = arith.addf %3, %7 : vector<8x64xf32>
    %c1 = arith.constant 1 : index
    %c0_6 = arith.constant 0 : index
    %9 = vector.load %arg6[%c1, %c0_6] : memref<16x256xf32, #tpu.memory_space<vmem>>, vector<1x64xf32>
    %10 = vector.shape_cast %9 : vector<1x64xf32> to vector<64xf32>
    %c2 = arith.constant 2 : index
    %c0_7 = arith.constant 0 : index
    %11 = vector.load %arg6[%c2, %c0_7] : memref<16x256xf32, #tpu.memory_space<vmem>>, vector<1x64xf32>
    %12 = vector.shape_cast %11 : vector<1x64xf32> to vector<64xf32>
    %cst_8 = arith.constant dense<0.000000e+00> : vector<8xf32>
    %13 = vector.multi_reduction <add>, %8, %cst_8 [1] : vector<8x64xf32> to vector<8xf32>
    %14 = vector.shape_cast %13 : vector<8xf32> to vector<8x1xf32>
    %cst_9 = arith.constant 6.400000e+01 : f32
    %15 = vector.broadcast %cst_9 : f32 to vector<8x1xf32>
    %16 = arith.divf %14, %15 : vector<8x1xf32>
    %17 = vector.broadcast %16 : vector<8x1xf32> to vector<8x64xf32>
    %18 = arith.subf %8, %17 : vector<8x64xf32>
    %19 = arith.mulf %18, %18 : vector<8x64xf32>
    %cst_10 = arith.constant dense<0.000000e+00> : vector<8xf32>
    %20 = vector.multi_reduction <add>, %19, %cst_10 [1] : vector<8x64xf32> to vector<8xf32>
    %21 = vector.shape_cast %20 : vector<8xf32> to vector<8x1xf32>
    %cst_11 = arith.constant 6.400000e+01 : f32
    %22 = vector.broadcast %cst_11 : f32 to vector<8x1xf32>
    %23 = arith.divf %21, %22 : vector<8x1xf32>
    %cst_12 = arith.constant 9.99999974E-6 : f32
    %24 = vector.broadcast %cst_12 : f32 to vector<8x1xf32>
    %25 = arith.addf %23, %24 : vector<8x1xf32>
    %26 = math.rsqrt %25 : vector<8x1xf32>
    %27 = vector.shape_cast %10 : vector<64xf32> to vector<1x64xf32>
    %28 = vector.broadcast %26 : vector<8x1xf32> to vector<8x64xf32>
    %29 = vector.broadcast %27 : vector<1x64xf32> to vector<8x64xf32>
    %30 = arith.mulf %28, %29 : vector<8x64xf32>
    %31 = arith.mulf %18, %30 : vector<8x64xf32>
    %32 = vector.shape_cast %12 : vector<64xf32> to vector<1x64xf32>
    %33 = vector.broadcast %32 : vector<1x64xf32> to vector<8x64xf32>
    %34 = arith.addf %31, %33 : vector<8x64xf32>
    %c0_13 = arith.constant 0 : index
    %c0_14 = arith.constant 0 : index
    %c0_15 = arith.constant 0 : index
    %35 = vector.load %arg3[%c0_13, %c0_14, %c0_15] : memref<2x64x256xf32, #tpu.memory_space<vmem>>, vector<1x64x256xf32>
    %36 = vector.shape_cast %35 : vector<1x64x256xf32> to vector<64x256xf32>
    %cst_16 = arith.constant dense<0.000000e+00> : vector<8x256xf32>
    %37 = tpu.matmul %34, %36, %cst_16 {dimension_numbers = #tpu.dot_dimension_numbers<[1], [0], [0], [1], [0, 0, 1, 1], [], []>} : vector<8x64xf32>, vector<64x256xf32>, vector<8x256xf32> -> vector<8x256xf32>
    %c3 = arith.constant 3 : index
    %c0_17 = arith.constant 0 : index
    %38 = vector.load %arg6[%c3, %c0_17] : memref<16x256xf32, #tpu.memory_space<vmem>>, vector<1x256xf32>
    %39 = vector.shape_cast %38 : vector<1x256xf32> to vector<256xf32>
    %40 = vector.shape_cast %39 : vector<256xf32> to vector<1x256xf32>
    %41 = vector.broadcast %40 : vector<1x256xf32> to vector<8x256xf32>
    %42 = arith.addf %37, %41 : vector<8x256xf32>
    %cst_18 = arith.constant 5.000000e-01 : f32
    %43 = vector.broadcast %cst_18 : f32 to vector<8x256xf32>
    %44 = arith.mulf %43, %42 : vector<8x256xf32>
    %cst_19 = arith.constant 0.707106769 : f32
    %45 = vector.broadcast %cst_19 : f32 to vector<8x256xf32>
    %46 = arith.mulf %42, %45 : vector<8x256xf32>
    %47 = math.erf %46 : vector<8x256xf32>
    %cst_20 = arith.constant 1.000000e+00 : f32
    %48 = vector.broadcast %cst_20 : f32 to vector<8x256xf32>
    %49 = arith.addf %48, %47 : vector<8x256xf32>
    %50 = arith.mulf %44, %49 : vector<8x256xf32>
    %c0_21 = arith.constant 0 : index
    %c0_22 = arith.constant 0 : index
    %c0_23 = arith.constant 0 : index
    %51 = vector.load %arg4[%c0_21, %c0_22, %c0_23] : memref<2x256x64xf32, #tpu.memory_space<vmem>>, vector<1x256x64xf32>
    %52 = vector.shape_cast %51 : vector<1x256x64xf32> to vector<256x64xf32>
    %cst_24 = arith.constant dense<0.000000e+00> : vector<8x64xf32>
    %53 = tpu.matmul %50, %52, %cst_24 {dimension_numbers = #tpu.dot_dimension_numbers<[1], [0], [0], [1], [0, 0, 1, 1], [], []>} : vector<8x256xf32>, vector<256x64xf32>, vector<8x64xf32> -> vector<8x64xf32>
    %c4 = arith.constant 4 : index
    %c0_25 = arith.constant 0 : index
    %54 = vector.load %arg6[%c4, %c0_25] : memref<16x256xf32, #tpu.memory_space<vmem>>, vector<1x64xf32>
    %55 = vector.shape_cast %54 : vector<1x64xf32> to vector<64xf32>
    %56 = vector.shape_cast %55 : vector<64xf32> to vector<1x64xf32>
    %57 = vector.broadcast %56 : vector<1x64xf32> to vector<8x64xf32>
    %58 = arith.addf %53, %57 : vector<8x64xf32>
    %59 = arith.addf %34, %58 : vector<8x64xf32>
    %cst_26 = arith.constant dense<0.000000e+00> : vector<8xf32>
    %60 = vector.multi_reduction <add>, %59, %cst_26 [1] : vector<8x64xf32> to vector<8xf32>
    %61 = vector.shape_cast %60 : vector<8xf32> to vector<8x1xf32>
    %cst_27 = arith.constant 6.400000e+01 : f32
    %62 = vector.broadcast %cst_27 : f32 to vector<8x1xf32>
    %63 = arith.divf %61, %62 : vector<8x1xf32>
    %64 = vector.broadcast %63 : vector<8x1xf32> to vector<8x64xf32>
    %65 = arith.subf %59, %64 : vector<8x64xf32>
    %66 = arith.mulf %65, %65 : vector<8x64xf32>
    %cst_28 = arith.constant dense<0.000000e+00> : vector<8xf32>
    %67 = vector.multi_reduction <add>, %66, %cst_28 [1] : vector<8x64xf32> to vector<8xf32>
    %68 = vector.shape_cast %67 : vector<8xf32> to vector<8x1xf32>
    %cst_29 = arith.constant 6.400000e+01 : f32
    %69 = vector.broadcast %cst_29 : f32 to vector<8x1xf32>
    %70 = arith.divf %68, %69 : vector<8x1xf32>
    %cst_30 = arith.constant 9.99999974E-6 : f32
    %71 = vector.broadcast %cst_30 : f32 to vector<8x1xf32>
    %72 = arith.addf %70, %71 : vector<8x1xf32>
    %73 = math.rsqrt %72 : vector<8x1xf32>
    %74 = vector.broadcast %73 : vector<8x1xf32> to vector<8x64xf32>
    %75 = arith.mulf %65, %74 : vector<8x64xf32>
    %c1_31 = arith.constant 1 : index
    %c0_32 = arith.constant 0 : index
    %c0_33 = arith.constant 0 : index
    %76 = vector.load %arg2[%c1_31, %c0_32, %c0_33] : memref<2x64x64xf32, #tpu.memory_space<vmem>>, vector<1x64x64xf32>
    %77 = vector.shape_cast %76 : vector<1x64x64xf32> to vector<64x64xf32>
    %cst_34 = arith.constant dense<0.000000e+00> : vector<8x64xf32>
    %78 = tpu.matmul %75, %77, %cst_34 {dimension_numbers = #tpu.dot_dimension_numbers<[1], [0], [0], [1], [0, 0, 1, 1], [], []>} : vector<8x64xf32>, vector<64x64xf32>, vector<8x64xf32> -> vector<8x64xf32>
    %c5 = arith.constant 5 : index
    %c0_35 = arith.constant 0 : index
    %79 = vector.load %arg6[%c5, %c0_35] : memref<16x256xf32, #tpu.memory_space<vmem>>, vector<1x64xf32>
    %80 = vector.shape_cast %79 : vector<1x64xf32> to vector<64xf32>
    %81 = vector.shape_cast %80 : vector<64xf32> to vector<1x64xf32>
    %82 = vector.broadcast %81 : vector<1x64xf32> to vector<8x64xf32>
    %83 = arith.addf %78, %82 : vector<8x64xf32>
    %c6 = arith.constant 6 : index
    %c0_36 = arith.constant 0 : index
    %84 = vector.load %arg6[%c6, %c0_36] : memref<16x256xf32, #tpu.memory_space<vmem>>, vector<1x64xf32>
    %85 = vector.shape_cast %84 : vector<1x64xf32> to vector<64xf32>
    %c7 = arith.constant 7 : index
    %c0_37 = arith.constant 0 : index
    %86 = vector.load %arg6[%c7, %c0_37] : memref<16x256xf32, #tpu.memory_space<vmem>>, vector<1x64xf32>
    %87 = vector.shape_cast %86 : vector<1x64xf32> to vector<64xf32>
    %cst_38 = arith.constant dense<0.000000e+00> : vector<8xf32>
    %88 = vector.multi_reduction <add>, %83, %cst_38 [1] : vector<8x64xf32> to vector<8xf32>
    %89 = vector.shape_cast %88 : vector<8xf32> to vector<8x1xf32>
    %cst_39 = arith.constant 6.400000e+01 : f32
    %90 = vector.broadcast %cst_39 : f32 to vector<8x1xf32>
    %91 = arith.divf %89, %90 : vector<8x1xf32>
    %92 = vector.broadcast %91 : vector<8x1xf32> to vector<8x64xf32>
    %93 = arith.subf %83, %92 : vector<8x64xf32>
    %94 = arith.mulf %93, %93 : vector<8x64xf32>
    %cst_40 = arith.constant dense<0.000000e+00> : vector<8xf32>
    %95 = vector.multi_reduction <add>, %94, %cst_40 [1] : vector<8x64xf32> to vector<8xf32>
    %96 = vector.shape_cast %95 : vector<8xf32> to vector<8x1xf32>
    %cst_41 = arith.constant 6.400000e+01 : f32
    %97 = vector.broadcast %cst_41 : f32 to vector<8x1xf32>
    %98 = arith.divf %96, %97 : vector<8x1xf32>
    %cst_42 = arith.constant 9.99999974E-6 : f32
    %99 = vector.broadcast %cst_42 : f32 to vector<8x1xf32>
    %100 = arith.addf %98, %99 : vector<8x1xf32>
    %101 = math.rsqrt %100 : vector<8x1xf32>
    %102 = vector.shape_cast %85 : vector<64xf32> to vector<1x64xf32>
    %103 = vector.broadcast %101 : vector<8x1xf32> to vector<8x64xf32>
    %104 = vector.broadcast %102 : vector<1x64xf32> to vector<8x64xf32>
    %105 = arith.mulf %103, %104 : vector<8x64xf32>
    %106 = arith.mulf %93, %105 : vector<8x64xf32>
    %107 = vector.shape_cast %87 : vector<64xf32> to vector<1x64xf32>
    %108 = vector.broadcast %107 : vector<1x64xf32> to vector<8x64xf32>
    %109 = arith.addf %106, %108 : vector<8x64xf32>
    %c1_43 = arith.constant 1 : index
    %c0_44 = arith.constant 0 : index
    %c0_45 = arith.constant 0 : index
    %110 = vector.load %arg3[%c1_43, %c0_44, %c0_45] : memref<2x64x256xf32, #tpu.memory_space<vmem>>, vector<1x64x256xf32>
    %111 = vector.shape_cast %110 : vector<1x64x256xf32> to vector<64x256xf32>
    %cst_46 = arith.constant dense<0.000000e+00> : vector<8x256xf32>
    %112 = tpu.matmul %109, %111, %cst_46 {dimension_numbers = #tpu.dot_dimension_numbers<[1], [0], [0], [1], [0, 0, 1, 1], [], []>} : vector<8x64xf32>, vector<64x256xf32>, vector<8x256xf32> -> vector<8x256xf32>
    %c8 = arith.constant 8 : index
    %c0_47 = arith.constant 0 : index
    %113 = vector.load %arg6[%c8, %c0_47] : memref<16x256xf32, #tpu.memory_space<vmem>>, vector<1x256xf32>
    %114 = vector.shape_cast %113 : vector<1x256xf32> to vector<256xf32>
    %115 = vector.shape_cast %114 : vector<256xf32> to vector<1x256xf32>
    %116 = vector.broadcast %115 : vector<1x256xf32> to vector<8x256xf32>
    %117 = arith.addf %112, %116 : vector<8x256xf32>
    %cst_48 = arith.constant 5.000000e-01 : f32
    %118 = vector.broadcast %cst_48 : f32 to vector<8x256xf32>
    %119 = arith.mulf %118, %117 : vector<8x256xf32>
    %cst_49 = arith.constant 0.707106769 : f32
    %120 = vector.broadcast %cst_49 : f32 to vector<8x256xf32>
    %121 = arith.mulf %117, %120 : vector<8x256xf32>
    %122 = math.erf %121 : vector<8x256xf32>
    %cst_50 = arith.constant 1.000000e+00 : f32
    %123 = vector.broadcast %cst_50 : f32 to vector<8x256xf32>
    %124 = arith.addf %123, %122 : vector<8x256xf32>
    %125 = arith.mulf %119, %124 : vector<8x256xf32>
    %c1_51 = arith.constant 1 : index
    %c0_52 = arith.constant 0 : index
    %c0_53 = arith.constant 0 : index
    %126 = vector.load %arg4[%c1_51, %c0_52, %c0_53] : memref<2x256x64xf32, #tpu.memory_space<vmem>>, vector<1x256x64xf32>
    %127 = vector.shape_cast %126 : vector<1x256x64xf32> to vector<256x64xf32>
    %cst_54 = arith.constant dense<0.000000e+00> : vector<8x64xf32>
    %128 = tpu.matmul %125, %127, %cst_54 {dimension_numbers = #tpu.dot_dimension_numbers<[1], [0], [0], [1], [0, 0, 1, 1], [], []>} : vector<8x256xf32>, vector<256x64xf32>, vector<8x64xf32> -> vector<8x64xf32>
    %c9 = arith.constant 9 : index
    %c0_55 = arith.constant 0 : index
    %129 = vector.load %arg6[%c9, %c0_55] : memref<16x256xf32, #tpu.memory_space<vmem>>, vector<1x64xf32>
    %130 = vector.shape_cast %129 : vector<1x64xf32> to vector<64xf32>
    %131 = vector.shape_cast %130 : vector<64xf32> to vector<1x64xf32>
    %132 = vector.broadcast %131 : vector<1x64xf32> to vector<8x64xf32>
    %133 = arith.addf %128, %132 : vector<8x64xf32>
    %134 = arith.addf %109, %133 : vector<8x64xf32>
    %c10 = arith.constant 10 : index
    %c0_56 = arith.constant 0 : index
    %135 = vector.load %arg6[%c10, %c0_56] : memref<16x256xf32, #tpu.memory_space<vmem>>, vector<1x64xf32>
    %136 = vector.shape_cast %135 : vector<1x64xf32> to vector<64xf32>
    %c11 = arith.constant 11 : index
    %c0_57 = arith.constant 0 : index
    %137 = vector.load %arg6[%c11, %c0_57] : memref<16x256xf32, #tpu.memory_space<vmem>>, vector<1x64xf32>
    %138 = vector.shape_cast %137 : vector<1x64xf32> to vector<64xf32>
    %cst_58 = arith.constant dense<0.000000e+00> : vector<8xf32>
    %139 = vector.multi_reduction <add>, %134, %cst_58 [1] : vector<8x64xf32> to vector<8xf32>
    %140 = vector.shape_cast %139 : vector<8xf32> to vector<8x1xf32>
    %cst_59 = arith.constant 6.400000e+01 : f32
    %141 = vector.broadcast %cst_59 : f32 to vector<8x1xf32>
    %142 = arith.divf %140, %141 : vector<8x1xf32>
    %143 = vector.broadcast %142 : vector<8x1xf32> to vector<8x64xf32>
    %144 = arith.subf %134, %143 : vector<8x64xf32>
    %145 = arith.mulf %144, %144 : vector<8x64xf32>
    %cst_60 = arith.constant dense<0.000000e+00> : vector<8xf32>
    %146 = vector.multi_reduction <add>, %145, %cst_60 [1] : vector<8x64xf32> to vector<8xf32>
    %147 = vector.shape_cast %146 : vector<8xf32> to vector<8x1xf32>
    %cst_61 = arith.constant 6.400000e+01 : f32
    %148 = vector.broadcast %cst_61 : f32 to vector<8x1xf32>
    %149 = arith.divf %147, %148 : vector<8x1xf32>
    %cst_62 = arith.constant 9.99999974E-6 : f32
    %150 = vector.broadcast %cst_62 : f32 to vector<8x1xf32>
    %151 = arith.addf %149, %150 : vector<8x1xf32>
    %152 = math.rsqrt %151 : vector<8x1xf32>
    %153 = vector.shape_cast %136 : vector<64xf32> to vector<1x64xf32>
    %154 = vector.broadcast %152 : vector<8x1xf32> to vector<8x64xf32>
    %155 = vector.broadcast %153 : vector<1x64xf32> to vector<8x64xf32>
    %156 = arith.mulf %154, %155 : vector<8x64xf32>
    %157 = arith.mulf %144, %156 : vector<8x64xf32>
    %158 = vector.shape_cast %138 : vector<64xf32> to vector<1x64xf32>
    %159 = vector.broadcast %158 : vector<1x64xf32> to vector<8x64xf32>
    %160 = arith.addf %157, %159 : vector<8x64xf32>
    %cst_63 = arith.constant dense<0.000000e+00> : vector<8xf32>
    %161 = vector.multi_reduction <add>, %160, %cst_63 [1] : vector<8x64xf32> to vector<8xf32>
    %162 = vector.shape_cast %161 : vector<8xf32> to vector<8x1xf32>
    %cst_64 = arith.constant 6.400000e+01 : f32
    %163 = vector.broadcast %cst_64 : f32 to vector<8x1xf32>
    %164 = arith.divf %162, %163 : vector<8x1xf32>
    %165 = vector.broadcast %164 : vector<8x1xf32> to vector<8x64xf32>
    %166 = arith.subf %160, %165 : vector<8x64xf32>
    %167 = arith.mulf %166, %166 : vector<8x64xf32>
    %cst_65 = arith.constant dense<0.000000e+00> : vector<8xf32>
    %168 = vector.multi_reduction <add>, %167, %cst_65 [1] : vector<8x64xf32> to vector<8xf32>
    %169 = vector.shape_cast %168 : vector<8xf32> to vector<8x1xf32>
    %cst_66 = arith.constant 6.400000e+01 : f32
    %170 = vector.broadcast %cst_66 : f32 to vector<8x1xf32>
    %171 = arith.divf %169, %170 : vector<8x1xf32>
    %cst_67 = arith.constant 9.99999974E-6 : f32
    %172 = vector.broadcast %cst_67 : f32 to vector<8x1xf32>
    %173 = arith.addf %171, %172 : vector<8x1xf32>
    %174 = math.rsqrt %173 : vector<8x1xf32>
    %175 = vector.broadcast %174 : vector<8x1xf32> to vector<8x64xf32>
    %176 = arith.mulf %166, %175 : vector<8x64xf32>
    %c0_68 = arith.constant 0 : index
    %c0_69 = arith.constant 0 : index
    %177 = vector.load %arg5[%c0_68, %c0_69] : memref<64x128xf32, #tpu.memory_space<vmem>>, vector<64x128xf32>
    %cst_70 = arith.constant dense<0.000000e+00> : vector<8x128xf32>
    %178 = tpu.matmul %176, %177, %cst_70 {dimension_numbers = #tpu.dot_dimension_numbers<[1], [0], [0], [1], [0, 0, 1, 1], [], []>} : vector<8x64xf32>, vector<64x128xf32>, vector<8x128xf32> -> vector<8x128xf32>
    %c12 = arith.constant 12 : index
    %c0_71 = arith.constant 0 : index
    %179 = vector.load %arg6[%c12, %c0_71] : memref<16x256xf32, #tpu.memory_space<vmem>>, vector<1x128xf32>
    %180 = vector.shape_cast %179 : vector<1x128xf32> to vector<128xf32>
    %181 = vector.shape_cast %180 : vector<128xf32> to vector<1x128xf32>
    %182 = vector.broadcast %181 : vector<1x128xf32> to vector<8x128xf32>
    %183 = arith.addf %178, %182 : vector<8x128xf32>
    %c0_72 = arith.constant 0 : index
    %c0_73 = arith.constant 0 : index
    %184 = vector.load %arg7[%c0_72, %c0_73] : memref<8x128xf32, #tpu.memory_space<vmem>>, vector<8x128xf32>
    tpu.vector_store %arg7[%c0_72, %c0_73], %183 {strides = array<i32>} : memref<8x128xf32, #tpu.memory_space<vmem>>, vector<8x128xf32>,
    return
  }
  func.func @transform_0(%arg0: i32) -> (i32, i32) {
    %c0_i32 = arith.constant 0 : i32
    %c0_i32_0 = arith.constant 0 : i32
    return %arg0, %c0_i32 : i32, i32
  }
  func.func @transform_1(%arg0: i32) -> (i32, i32, i32) {
    %c0_i32 = arith.constant 0 : i32
    %c0_i32_0 = arith.constant 0 : i32
    %c0_i32_1 = arith.constant 0 : i32
    %c0_i32_2 = arith.constant 0 : i32
    return %c0_i32, %c0_i32_0, %c0_i32_1 : i32, i32, i32
  }
  func.func @transform_2(%arg0: i32) -> (i32, i32, i32) {
    %c0_i32 = arith.constant 0 : i32
    %c0_i32_0 = arith.constant 0 : i32
    %c0_i32_1 = arith.constant 0 : i32
    %c0_i32_2 = arith.constant 0 : i32
    return %c0_i32, %c0_i32_0, %c0_i32_1 : i32, i32, i32
  }
  func.func @transform_3(%arg0: i32) -> (i32, i32, i32) {
    %c0_i32 = arith.constant 0 : i32
    %c0_i32_0 = arith.constant 0 : i32
    %c0_i32_1 = arith.constant 0 : i32
    %c0_i32_2 = arith.constant 0 : i32
    return %c0_i32, %c0_i32_0, %c0_i32_1 : i32, i32, i32
  }
  func.func @transform_4(%arg0: i32) -> (i32, i32) {
    %c0_i32 = arith.constant 0 : i32
    %c0_i32_0 = arith.constant 0 : i32
    %c0_i32_1 = arith.constant 0 : i32
    return %c0_i32, %c0_i32_0 : i32, i32
  }
  func.func @transform_5(%arg0: i32) -> (i32, i32) {
    %c0_i32 = arith.constant 0 : i32
    %c0_i32_0 = arith.constant 0 : i32
    %c0_i32_1 = arith.constant 0 : i32
    return %c0_i32, %c0_i32_0 : i32, i32
  }
  func.func @transform_6(%arg0: i32) -> (i32, i32) {
    %c0_i32 = arith.constant 0 : i32
    %c0_i32_0 = arith.constant 0 : i32
    return %arg0, %c0_i32 : i32, i32
  }
}

</mosaic_0001>

<llo_original>
// kernel: tpu_custom_call.1
$region0: #{tpu_custom_call.1}
  #allocation0 [shape = 'u32[]', space=smem, size = 0x4, offset = 0x4, fixed_abs, tag = 'smem constant byte address 0x4 - core index']
  #allocation1 [shape = 'u32[144,128]{1,0:T(1,128)}', space=vmem, size = 0x12000, scoped, tag = 'internal scratch']
  %s0 = inlined_call_operand.vmem [shape: f32[16,64], index: 0, kind: input, shape index: {}]
  %s1 = inlined_call_operand.vmem [shape: f32[2,64,64], index: 1, kind: input, shape index: {}]
  %s2 = inlined_call_operand.vmem [shape: f32[2,64,256], index: 2, kind: input, shape index: {}]
  %s3 = inlined_call_operand.vmem [shape: f32[2,256,64], index: 3, kind: input, shape index: {}]
  %s4 = inlined_call_operand.vmem [shape: f32[64,128], index: 4, kind: input, shape index: {}]
  %s5 = inlined_call_operand.vmem [shape: f32[16,256], index: 5, kind: input, shape index: {}]
  %s6 = inlined_call_operand.hbm [shape: f32[16,128], index: 6, kind: output, shape index: {}]
  %s7 = sld [smem:[#allocation0]]
  $region57: #{tpu_custom_call.1} parent=0
    _
  %s9 = ssub.s32 1, %s7
  %s10 = scalar_select 0, %s9, %s7
  $region1: #{tpu_custom_call.1} parent=0
    #allocation2 [shape = 'u8[8192]{0}', space=vmem, size = 0x2000, scoped, tag = 'output window, operand 0']
    #allocation3 [shape = 's32[2]{0}', space=sflag, size = 0x8, scoped, tag = 'scoped memory for tpu_custom_call.1']
    %11 = vsyncpa [#allocation3], 0
    %s12 = scalar_lea.sflag [#allocation3], 1
    %13 = vsyncpa %s12, 0
    loop: start=0, step=1, limit=4
    $region2: #{tpu_custom_call.1} parent=1 // loop_pre_header
      _
    $region3: #{tpu_custom_call.1} parent=1 // loop_header
      %s15 = sphi 0, %s19
      %p16 = scmp.ge.s32.totalorder %s15, 4
      %s25 = sphi 0, %s27
      %s28 = sphi 0, %s25
      %s29 = sphi 0, %s28
      %s45 = sphi 0, %s29
      %s49 = sphi 0, %s49
      %s51 = sphi 0, %s49
      %s52 = sphi 0, %s51
      %s66 = sphi 0, %s52
      %s70 = sphi 0, %s70
      %s72 = sphi 0, %s70
      %s73 = sphi 0, %s72
      %s87 = sphi 0, %s73
      %s91 = sphi 0, %s91
      %s93 = sphi 0, %s91
      %s94 = sphi 0, %s93
      %s108 = sphi 0, %s94
      %s112 = sphi 0, %s112
      %s114 = sphi 0, %s112
      %s115 = sphi 0, %s114
      %s129 = sphi 0, %s115
      %s133 = sphi 0, %s133
      %s135 = sphi 0, %s133
      %s136 = sphi 0, %s135
      %s150 = sphi 0, %s136
      %s156 = sphi 0, %s158
      %s159 = sphi 0, %s156
      %s160 = sphi 0, %s159
      %s176 = sphi 0, %s160
    $region4: #{tpu_custom_call.1} parent=1 // loop_header_branch
      %18 = sbr.rel (%p16) target = $region8
    $region5: #{tpu_custom_call.1} parent=1 // loop_body
      %s20 = ssub.s32 %s15, 1
      %s21 = ssub.s32 %s15, 2
      %s22 = sadd.s32 %s15, 1
      %s23 = ssub.s32 %s15, %s22
      %p24 = scmp.eq.s32.totalorder %s23, 0
      %s26 = sadd.s32 %s25, 1
      %s27 = scalar_select %p24, %s25, %s26
      %p30 = pneg %p24
      %p31 = scmp.eq.s32.totalorder %s15, 1
      %p32 = por %p30, %p31
      %p33 = scmp.ne.s32.totalorder %s25, %s28
      %p34 = scmp.eq.s32.totalorder %s15, 0
      %p35 = por %p33, %p34
      %p36 = scmp.ne.s32.totalorder %s25, %s28
      %p37 = scmp.eq.s32.totalorder %s20, 1
      %p38 = por %p36, %p37
      %p39 = scmp.ne.s32.totalorder %s28, %s29
      %p40 = scmp.eq.s32.totalorder %s20, 0
      %p41 = por %p39, %p40
      %p42 = scmp.ne.s32.totalorder %s28, %s29
      %p43 = scmp.eq.s32.totalorder %s21, 1
      %p44 = por %p42, %p43
      %p46 = scmp.ne.s32.totalorder %s29, %s45
      %p47 = scmp.eq.s32.totalorder %s21, 0
      %p48 = por %p46, %p47
      %s50 = sadd.s32 %s49, 1
      %p53 = scmp.eq.s32.totalorder %s15, 1
      %p54 = scmp.ne.s32.totalorder %s49, %s51
      %p55 = scmp.eq.s32.totalorder %s15, 0
      %p56 = por %p54, %p55
      %p57 = scmp.ne.s32.totalorder %s49, %s51
      %p58 = scmp.eq.s32.totalorder %s20, 1
      %p59 = por %p57, %p58
      %p60 = scmp.ne.s32.totalorder %s51, %s52
      %p61 = scmp.eq.s32.totalorder %s20, 0
      %p62 = por %p60, %p61
      %p63 = scmp.ne.s32.totalorder %s51, %s52
      %p64 = scmp.eq.s32.totalorder %s21, 1
      %p65 = por %p63, %p64
      %p67 = scmp.ne.s32.totalorder %s52, %s66
      %p68 = scmp.eq.s32.totalorder %s21, 0
      %p69 = por %p67, %p68
      %s71 = sadd.s32 %s70, 1
      %p74 = scmp.eq.s32.totalorder %s15, 1
      %p75 = scmp.ne.s32.totalorder %s70, %s72
      %p76 = scmp.eq.s32.totalorder %s15, 0
      %p77 = por %p75, %p76
      %p78 = scmp.ne.s32.totalorder %s70, %s72
      %p79 = scmp.eq.s32.totalorder %s20, 1
      %p80 = por %p78, %p79
      %p81 = scmp.ne.s32.totalorder %s72, %s73
      %p82 = scmp.eq.s32.totalorder %s20, 0
      %p83 = por %p81, %p82
      %p84 = scmp.ne.s32.totalorder %s72, %s73
      %p85 = scmp.eq.s32.totalorder %s21, 1
      %p86 = por %p84, %p85
      %p88 = scmp.ne.s32.totalorder %s73, %s87
      %p89 = scmp.eq.s32.totalorder %s21, 0
      %p90 = por %p88, %p89
      %s92 = sadd.s32 %s91, 1
      %p95 = scmp.eq.s32.totalorder %s15, 1
      %p96 = scmp.ne.s32.totalorder %s91, %s93
      %p97 = scmp.eq.s32.totalorder %s15, 0
      %p98 = por %p96, %p97
      %p99 = scmp.ne.s32.totalorder %s91, %s93
      %p100 = scmp.eq.s32.totalorder %s20, 1
      %p101 = por %p99, %p100
      %p102 = scmp.ne.s32.totalorder %s93, %s94
      %p103 = scmp.eq.s32.totalorder %s20, 0
      %p104 = por %p102, %p103
      %p105 = scmp.ne.s32.totalorder %s93, %s94
      %p106 = scmp.eq.s32.totalorder %s21, 1
      %p107 = por %p105, %p106
      %p109 = scmp.ne.s32.totalorder %s94, %s108
      %p110 = scmp.eq.s32.totalorder %s21, 0
      %p111 = por %p109, %p110
      %s113 = sadd.s32 %s112, 1
      %p116 = scmp.eq.s32.totalorder %s15, 1
      %p117 = scmp.ne.s32.totalorder %s112, %s114
      %p118 = scmp.eq.s32.totalorder %s15, 0
      %p119 = por %p117, %p118
      %p120 = scmp.ne.s32.totalorder %s112, %s114
      %p121 = scmp.eq.s32.totalorder %s20, 1
      %p122 = por %p120, %p121
      %p123 = scmp.ne.s32.totalorder %s114, %s115
      %p124 = scmp.eq.s32.totalorder %s20, 0
      %p125 = por %p123, %p124
      %p126 = scmp.ne.s32.totalorder %s114, %s115
      %p127 = scmp.eq.s32.totalorder %s21, 1
      %p128 = por %p126, %p127
      %p130 = scmp.ne.s32.totalorder %s115, %s129
      %p131 = scmp.eq.s32.totalorder %s21, 0
      %p132 = por %p130, %p131
      %s134 = sadd.s32 %s133, 1
      %p137 = scmp.eq.s32.totalorder %s15, 1
      %p138 = scmp.ne.s32.totalorder %s133, %s135
      %p139 = scmp.eq.s32.totalorder %s15, 0
      %p140 = por %p138, %p139
      %p141 = scmp.ne.s32.totalorder %s133, %s135
      %p142 = scmp.eq.s32.totalorder %s20, 1
      %p143 = por %p141, %p142
      %p144 = scmp.ne.s32.totalorder %s135, %s136
      %p145 = scmp.eq.s32.totalorder %s20, 0
      %p146 = por %p144, %p145
      %p147 = scmp.ne.s32.totalorder %s135, %s136
      %p148 = scmp.eq.s32.totalorder %s21, 1
      %p149 = por %p147, %p148
      %p151 = scmp.ne.s32.totalorder %s136, %s150
      %p152 = scmp.eq.s32.totalorder %s21, 0
      %p153 = por %p151, %p152
      %s154 = ssub.s32 %s15, %s22
      %p155 = scmp.eq.s32.totalorder %s154, 0
      %s157 = sadd.s32 %s156, 1
      %s158 = scalar_select %p155, %s156, %s157
      %p161 = pneg %p155
      %p162 = scmp.eq.s32.totalorder %s15, 1
      %p163 = por %p161, %p162
      %p164 = scmp.ne.s32.totalorder %s156, %s159
      %p165 = scmp.eq.s32.totalorder %s15, 0
      %p166 = por %p164, %p165
      %p167 = scmp.ne.s32.totalorder %s156, %s159
      %p168 = scmp.eq.s32.totalorder %s20, 1
      %p169 = por %p167, %p168
      %p170 = scmp.ne.s32.totalorder %s159, %s160
      %p171 = scmp.eq.s32.totalorder %s20, 0
      %p172 = por %p170, %p171
      %p173 = scmp.ne.s32.totalorder %s159, %s160
      %p174 = scmp.eq.s32.totalorder %s21, 1
      %p175 = por %p173, %p174
      %p177 = scmp.ne.s32.totalorder %s160, %s176
      %p178 = scmp.eq.s32.totalorder %s21, 0
      %p179 = por %p177, %p178
      %p180 = scmp.le.s32.totalorder 1, %s15
      %p181 = scmp.lt.s32.totalorder %s15, 3
      %p182 = pnand %p180, %p181
      %p183 = pneg %p182
      // Predicated region
      $region9: #{tpu_custom_call.1} parent=5 // pred_check
        _
      $region10: #{tpu_custom_call.1} parent=5 // pred_check_branch
        %185 = sbr.rel (%p182) target = $region12
      $region11: #{tpu_custom_call.1} parent=5 // pred_region
        %s186 = ssub.s32 %s15, 1
        // Predicated region
        $region13: #{tpu_custom_call.1} parent=11 // pred_check
          %p187 = pneg %p62
        $region14: #{tpu_custom_call.1} parent=11 // pred_check_branch
          %189 = sbr.rel (%p187) target = $region16
        $region15: #{tpu_custom_call.1} parent=11 // pred_region
          _
        $region16: #{tpu_custom_call.1} parent=11 // pred_fallthru
          _
        // Predicated region
        $region17: #{tpu_custom_call.1} parent=11 // pred_check
          %p190 = pneg %p83
        $region18: #{tpu_custom_call.1} parent=11 // pred_check_branch
          %192 = sbr.rel (%p190) target = $region20
        $region19: #{tpu_custom_call.1} parent=11 // pred_region
          _
        $region20: #{tpu_custom_call.1} parent=11 // pred_fallthru
          _
        // Predicated region
        $region21: #{tpu_custom_call.1} parent=11 // pred_check
          %p193 = pneg %p104
        $region22: #{tpu_custom_call.1} parent=11 // pred_check_branch
          %195 = sbr.rel (%p193) target = $region24
        $region23: #{tpu_custom_call.1} parent=11 // pred_region
          _
        $region24: #{tpu_custom_call.1} parent=11 // pred_fallthru
          _
        // Predicated region
        $region25: #{tpu_custom_call.1} parent=11 // pred_check
          %p196 = pneg %p125
        $region26: #{tpu_custom_call.1} parent=11 // pred_check_branch
          %198 = sbr.rel (%p196) target = $region28
        $region27: #{tpu_custom_call.1} parent=11 // pred_region
          _
        $region28: #{tpu_custom_call.1} parent=11 // pred_fallthru
          _
        // Predicated region
        $region29: #{tpu_custom_call.1} parent=11 // pred_check
          %p199 = pneg %p146
        $region30: #{tpu_custom_call.1} parent=11 // pred_check_branch
          %201 = sbr.rel (%p199) target = $region32
        $region31: #{tpu_custom_call.1} parent=11 // pred_region
          _
        $region32: #{tpu_custom_call.1} parent=11 // pred_fallthru
          _
      $region12: #{tpu_custom_call.1} parent=5 // pred_fallthru
        _
      %p202 = scmp.lt.s32.totalorder %s15, 2
      // Predicated region
      $region33: #{tpu_custom_call.1} parent=5 // pred_check
        %p203 = pneg %p202
      $region34: #{tpu_custom_call.1} parent=5 // pred_check_branch
        %205 = sbr.rel (%p203) target = $region36
      $region35: #{tpu_custom_call.1} parent=5 // pred_region
        // Predicated region
        $region37: #{tpu_custom_call.1} parent=35 // pred_check
          %p206 = pneg %p35
        $region38: #{tpu_custom_call.1} parent=35 // pred_check_branch
          %208 = sbr.rel (%p206) target = $region40
        $region39: #{tpu_custom_call.1} parent=35 // pred_region
          %p209 = scmp.lt.s32.totalorder %s15, 1
          %s210 = scalar_select %p209, %s15, 1
          %s211 = smul.addr %s210, 8
          %s212 = scalar_lea.vmem %s0, %s211
        $region40: #{tpu_custom_call.1} parent=35 // pred_fallthru
          _
      $region36: #{tpu_custom_call.1} parent=5 // pred_fallthru
        _
      %p213 = scmp.le.s32.totalorder 1, %s15
      %p214 = scmp.lt.s32.totalorder %s15, 3
      %p215 = pnand %p213, %p214
      %p216 = pneg %p215
      // Predicated region
      $region41: #{tpu_custom_call.1} parent=5 // pred_check
        _
      $region42: #{tpu_custom_call.1} parent=5 // pred_check_branch
        %218 = sbr.rel (%p215) target = $region44
      $region43: #{tpu_custom_call.1} parent=5 // pred_region
        %s219 = ssub.s32 %s15, 1
        %p220 = scmp.lt.s32.totalorder %s20, 1
        %s221 = scalar_select %p220, %s20, 1
        %s222 = smul.addr %s221, 8
        %s223 = scalar_lea.vmem %s0, %s222
        %p224 = pneg %p41
        %p225 = pneg %p38
        %p226 = pneg %p62
        %p227 = pneg %p59
        %p228 = pneg %p83
        %p229 = pneg %p80
        %p230 = pneg %p104
        %p231 = pneg %p101
        %p232 = pneg %p125
        %p233 = pneg %p122
        %p234 = pneg %p146
        %p235 = pneg %p143
        %p236 = pneg %p172
        %p237 = pneg %p169
        %s238 = sand.u32 %s159, 1
        %s239 = scalar_lea.sflag [#allocation3], %s238
        %s240 = sand.u32 %s159, 1
        %s241 = smul.addr %s240, 8
        %s242 = scalar_lea.vmem [#allocation2], %s241
        %p243 = scmp.lt.s32.totalorder %s20, 1
        %s244 = scalar_select %p243, %s20, 1
        %s245 = smul.addr %s244, 8
        %s246 = scalar_lea.vmem %s0, %s245
        %v247 = vld [vmem:[%s246] sm:$0xff]
        %v248 = vld [vmem:[%s1] sm:$0xff]
        %v249 = vld [vmem:[%s1 + $0x8] sm:$0xff]
        %v250 = vld [vmem:[%s1 + $0x10] sm:$0xff]
        %v251 = vld [vmem:[%s1 + $0x18] sm:$0xff]
        %v252 = vld [vmem:[%s1 + $0x20] sm:$0xff]
        %v253 = vld [vmem:[%s1 + $0x28] sm:$0xff]
        %v254 = vld [vmem:[%s1 + $0x30] sm:$0xff]
        %v255 = vld [vmem:[%s1 + $0x38] sm:$0xff]
        %v256 = vld [vmem:[%s5] ss:$0 sm:$0xff]
        %vm257 = vcmask 523264
        %v259 = vsel %vm257, %v247, 0
        %261 = vmatprep.subr.mxu0 0.0
        %262 = vmatpush1.msra.mxu0 0.0
        %263 = vmatprep.subr.mxu0 0.0
        %264 = vmatpush1.msra.mxu0 0.0
        %265 = vmatprep.subr.mxu0 0.0
        %266 = vmatpush1.msra.mxu0 0.0
        %267 = vmatprep.subr.mxu0 0.0
        %268 = vmatpush1.msra.mxu0 0.0
        %269 = vmatprep.subr.mxu0 0.0
        %270 = vmatpush1.msra.mxu0 0.0
        %271 = vmatprep.subr.mxu0 0.0
        %272 = vmatpush1.msra.mxu0 0.0
        %273 = vmatprep.subr.mxu0 0.0
        %274 = vmatpush1.msra.mxu0 0.0
        %275 = vmatprep.subr.mxu0 0.0
        %276 = vmatpush1.msra.mxu0 0.0
        %277 = vmatprep.subr.mxu0 0.0
        %278 = vmatpush1.msra.mxu0 %v255
        %279 = vmatprep.subr.mxu0 0.0
        %280 = vmatpush1.msra.mxu0 %v254
        %281 = vmatprep.subr.mxu0 0.0
        %282 = vmatpush1.msra.mxu0 %v253
        %283 = vmatprep.subr.mxu0 0.0
        %284 = vmatpush1.msra.mxu0 %v252
        %285 = vmatprep.subr.mxu0 0.0
        %286 = vmatpush1.msra.mxu0 %v251
        %287 = vmatprep.subr.mxu0 0.0
        %288 = vmatpush1.msra.mxu0 %v250
        %289 = vmatprep.subr.mxu0 0.0
        %290 = vmatpush1.msra.mxu0 %v249
        %291 = vmatprep.subr.mxu0 0.0
        %292 = vmatpush1.msra.mxu0 %v248
        %293 = vmatprep.subr.mxu0 0.0
        %294 = vmatpush2.msra.mxu0 0.0
        %295 = vmatprep.subr.mxu0 0.0
        %296 = vmatpush2.msra.mxu0 0.0
        %297 = vmatprep.subr.mxu0 0.0
        %298 = vmatpush2.msra.mxu0 0.0
        %299 = vmatprep.subr.mxu0 0.0
        %300 = vmatpush2.msra.mxu0 0.0
        %301 = vmatprep.subr.mxu0 0.0
        %302 = vmatpush2.msra.mxu0 0.0
        %303 = vmatprep.subr.mxu0 0.0
        %304 = vmatpush2.msra.mxu0 0.0
        %305 = vmatprep.subr.mxu0 0.0
        %306 = vmatpush2.msra.mxu0 0.0
        %307 = vmatprep.subr.mxu0 0.0
        %308 = vmatpush2.msra.mxu0 0.0
        %309 = vmatprep.subr.mxu0 0.0
        %310 = vmatpush2.msra.mxu0 0.0
        %311 = vmatprep.subr.mxu0 0.0
        %312 = vmatpush2.msra.mxu0 0.0
        %313 = vmatprep.subr.mxu0 0.0
        %314 = vmatpush2.msra.mxu0 0.0
        %315 = vmatprep.subr.mxu0 0.0
        %316 = vmatpush2.msra.mxu0 0.0
        %317 = vmatprep.subr.mxu0 0.0
        %318 = vmatpush2.msra.mxu0 0.0
        %319 = vmatprep.subr.mxu0 0.0
        %320 = vmatpush2.msra.mxu0 0.0
        %321 = vmatprep.subr.mxu0 0.0
        %322 = vmatpush2.msra.mxu0 0.0
        %323 = vmatprep.subr.mxu0 0.0
        %324 = vmatpush2.msra.mxu0 0.0
        %325 = vmatprep.mubr.f32.mxu0 0.0
        %326 = vmatmul.mubr.f32.gmra.mxu0 %v259
        %v327 = vpop.f32.mrf.mxu0
        %v328 = vadd.f32 %v256, %v327
        %v329 = vpop.f32.mrf.mxu0
        %330 = vdwg.mxu0
        %v331 = vld [vmem:[%s5 + $0x1] ss:$0 sm:$0xff]
        %v332 = vld [vmem:[%s5 + $0x2] ss:$0 sm:$0xff]
        %v333 = vsel %vm257, %v328, 0.0
        %334 = vadd.xlane.f32.xlu0 %v333
        %v335 = vpop.xlane.xlu0 %334
        %v336 = vrcp.pop 64.0
        %v337 = vmul.f32 %v335, %v336
        %v338 = vsub.f32 %v328, %v337
        %v339 = vmul.f32 %v338, %v338
        %v340 = vsel %vm257, %v339, 0.0
        %341 = vadd.xlane.f32.xlu0 %v340
        %v342 = vpop.xlane.xlu0 %341
        %v343 = vmul.f32 %v342, %v336
        %v344 = vadd.f32 %v343, 1e-05
        %v345 = vrsqrt.pop %v344
        %v346 = vmul.f32 %v345, %v331
        %v347 = vmul.f32 %v338, %v346
        %v348 = vadd.f32 %v347, %v332
        %v349 = vld [vmem:[%s2] sm:$0xff]
        %v350 = vld [vmem:[%s2 + $0x8] sm:$0xff]
        %v351 = vld [vmem:[%s2 + $0x10] sm:$0xff]
        %v352 = vld [vmem:[%s2 + $0x18] sm:$0xff]
        %v353 = vld [vmem:[%s2 + $0x20] sm:$0xff]
        %v354 = vld [vmem:[%s2 + $0x28] sm:$0xff]
        %v355 = vld [vmem:[%s2 + $0x30] sm:$0xff]
        %v356 = vld [vmem:[%s2 + $0x38] sm:$0xff]
        %v357 = vld [vmem:[%s2 + $0x40] sm:$0xff]
        %v358 = vld [vmem:[%s2 + $0x48] sm:$0xff]
        %v359 = vld [vmem:[%s2 + $0x50] sm:$0xff]
        %v360 = vld [vmem:[%s2 + $0x58] sm:$0xff]
        %v361 = vld [vmem:[%s2 + $0x60] sm:$0xff]
        %v362 = vld [vmem:[%s2 + $0x68] sm:$0xff]
        %v363 = vld [vmem:[%s2 + $0x70] sm:$0xff]
        %v364 = vld [vmem:[%s2 + $0x78] sm:$0xff]
        %s365 = scalar_lea.vmem %s5, 3
        %v366 = vld [vmem:[%s365] ss:$8 sm:$0x3]
        %v368 = vlaneseq
        %v369 = vshrl.u32 %v368, 7
        %v370 = vsub.s32 0, %v369
        %v371 = vrot.slane %v366, %v370
        %v372 = vlaneseq
        %v373 = vshrl.u32 %v372, 7
        %v374 = vsub.s32 1, %v373
        %v375 = vrot.slane %v366, %v374
        %v379 = vsel %vm257, %v348, 0
        %381 = vmatprep.subr.mxu0 0.0
        %382 = vmatpush1.msra.mxu0 0.0
        %383 = vmatprep.subr.mxu0 0.0
        %384 = vmatpush1.msra.mxu0 0.0
        %385 = vmatprep.subr.mxu0 0.0
        %386 = vmatpush1.msra.mxu0 0.0
        %387 = vmatprep.subr.mxu0 0.0
        %388 = vmatpush1.msra.mxu0 0.0
        %389 = vmatprep.subr.mxu0 0.0
        %390 = vmatpush1.msra.mxu0 0.0
        %391 = vmatprep.subr.mxu0 0.0
        %392 = vmatpush1.msra.mxu0 0.0
        %393 = vmatprep.subr.mxu0 0.0
        %394 = vmatpush1.msra.mxu0 0.0
        %395 = vmatprep.subr.mxu0 0.0
        %396 = vmatpush1.msra.mxu0 0.0
        %397 = vmatprep.subr.mxu0 %v364
        %398 = vmatpush1.msra.mxu0 %v363
        %399 = vmatprep.subr.mxu0 %v362
        %400 = vmatpush1.msra.mxu0 %v361
        %401 = vmatprep.subr.mxu0 %v360
        %402 = vmatpush1.msra.mxu0 %v359
        %403 = vmatprep.subr.mxu0 %v358
        %404 = vmatpush1.msra.mxu0 %v357
        %405 = vmatprep.subr.mxu0 %v356
        %406 = vmatpush1.msra.mxu0 %v355
        %407 = vmatprep.subr.mxu0 %v354
        %408 = vmatpush1.msra.mxu0 %v353
        %409 = vmatprep.subr.mxu0 %v352
        %410 = vmatpush1.msra.mxu0 %v351
        %411 = vmatprep.subr.mxu0 %v350
        %412 = vmatpush1.msra.mxu0 %v349
        %413 = vmatprep.subr.mxu0 0.0
        %414 = vmatpush2.msra.mxu0 0.0
        %415 = vmatprep.subr.mxu0 0.0
        %416 = vmatpush2.msra.mxu0 0.0
        %417 = vmatprep.subr.mxu0 0.0
        %418 = vmatpush2.msra.mxu0 0.0
        %419 = vmatprep.subr.mxu0 0.0
        %420 = vmatpush2.msra.mxu0 0.0
        %421 = vmatprep.subr.mxu0 0.0
        %422 = vmatpush2.msra.mxu0 0.0
        %423 = vmatprep.subr.mxu0 0.0
        %424 = vmatpush2.msra.mxu0 0.0
        %425 = vmatprep.subr.mxu0 0.0
        %426 = vmatpush2.msra.mxu0 0.0
        %427 = vmatprep.subr.mxu0 0.0
        %428 = vmatpush2.msra.mxu0 0.0
        %429 = vmatprep.subr.mxu0 0.0
        %430 = vmatpush2.msra.mxu0 0.0
        %431 = vmatprep.subr.mxu0 0.0
        %432 = vmatpush2.msra.mxu0 0.0
        %433 = vmatprep.subr.mxu0 0.0
        %434 = vmatpush2.msra.mxu0 0.0
        %435 = vmatprep.subr.mxu0 0.0
        %436 = vmatpush2.msra.mxu0 0.0
        %437 = vmatprep.subr.mxu0 0.0
        %438 = vmatpush2.msra.mxu0 0.0
        %439 = vmatprep.subr.mxu0 0.0
        %440 = vmatpush2.msra.mxu0 0.0
        %441 = vmatprep.subr.mxu0 0.0
        %442 = vmatpush2.msra.mxu0 0.0
        %443 = vmatprep.subr.mxu0 0.0
        %444 = vmatpush2.msra.mxu0 0.0
        %445 = vmatprep.mubr.f32.mxu0 0.0
        %446 = vmatmul.mubr.f32.gmra.mxu0 %v379
        %v447 = vpop.f32.mrf.mxu0
        %v448 = vadd.f32 %v371, %v447
        %v449 = vpop.f32.mrf.mxu0
        %v450 = vadd.f32 %v375, %v449
        %451 = vdwg.mxu0
        %v452 = vmul.f32 %v448, 0.5
        %v453 = vmul.f32 %v450, 0.5
        %v454 = vmul.f32 %v448, 0.70710677
        %v455 = vmul.f32 %v450, 0.70710677
        %v456 = verf.f32.pop %v454
        %v457 = verf.f32.pop %v455
        %v458 = vadd.f32 %v456, 1.0
        %v459 = vadd.f32 %v457, 1.0
        %v460 = vmul.f32 %v452, %v458
        %v461 = vmul.f32 %v453, %v459
        %v462 = vld [vmem:[%s3] sm:$0xff]
        %v463 = vld [vmem:[%s3 + $0x8] sm:$0xff]
        %v464 = vld [vmem:[%s3 + $0x10] sm:$0xff]
        %v465 = vld [vmem:[%s3 + $0x18] sm:$0xff]
        %v466 = vld [vmem:[%s3 + $0x20] sm:$0xff]
        %v467 = vld [vmem:[%s3 + $0x28] sm:$0xff]
        %v468 = vld [vmem:[%s3 + $0x30] sm:$0xff]
        %v469 = vld [vmem:[%s3 + $0x38] sm:$0xff]
        %v470 = vld [vmem:[%s3 + $0x40] sm:$0xff]
        %v471 = vld [vmem:[%s3 + $0x48] sm:$0xff]
        %v472 = vld [vmem:[%s3 + $0x50] sm:$0xff]
        %v473 = vld [vmem:[%s3 + $0x58] sm:$0xff]
        %v474 = vld [vmem:[%s3 + $0x60] sm:$0xff]
        %v475 = vld [vmem:[%s3 + $0x68] sm:$0xff]
        %v476 = vld [vmem:[%s3 + $0x70] sm:$0xff]
        %v477 = vld [vmem:[%s3 + $0x78] sm:$0xff]
        %v478 = vld [vmem:[%s3 + $0x80] sm:$0xff]
        %v479 = vld [vmem:[%s3 + $0x88] sm:$0xff]
        %v480 = vld [vmem:[%s3 + $0x90] sm:$0xff]
        %v481 = vld [vmem:[%s3 + $0x98] sm:$0xff]
        %v482 = vld [vmem:[%s3 + $0xa0] sm:$0xff]
        %v483 = vld [vmem:[%s3 + $0xa8] sm:$0xff]
        %v484 = vld [vmem:[%s3 + $0xb0] sm:$0xff]
        %v485 = vld [vmem:[%s3 + $0xb8] sm:$0xff]
        %v486 = vld [vmem:[%s3 + $0xc0] sm:$0xff]
        %v487 = vld [vmem:[%s3 + $0xc8] sm:$0xff]
        %v488 = vld [vmem:[%s3 + $0xd0] sm:$0xff]
        %v489 = vld [vmem:[%s3 + $0xd8] sm:$0xff]
        %v490 = vld [vmem:[%s3 + $0xe0] sm:$0xff]
        %v491 = vld [vmem:[%s3 + $0xe8] sm:$0xff]
        %v492 = vld [vmem:[%s3 + $0xf0] sm:$0xff]
        %v493 = vld [vmem:[%s3 + $0xf8] sm:$0xff]
        %v494 = vld [vmem:[%s5 + $0x4] ss:$0 sm:$0xff]
        %495 = vmatprep.subr.mxu0 0.0
        %496 = vmatpush1.msra.mxu0 %v477
        %497 = vmatprep.subr.mxu0 0.0
        %498 = vmatpush1.msra.mxu0 %v476
        %499 = vmatprep.subr.mxu0 0.0
        %500 = vmatpush1.msra.mxu0 %v475
        %501 = vmatprep.subr.mxu0 0.0
        %502 = vmatpush1.msra.mxu0 %v474
        %503 = vmatprep.subr.mxu0 0.0
        %504 = vmatpush1.msra.mxu0 %v473
        %505 = vmatprep.subr.mxu0 0.0
        %506 = vmatpush1.msra.mxu0 %v472
        %507 = vmatprep.subr.mxu0 0.0
        %508 = vmatpush1.msra.mxu0 %v471
        %509 = vmatprep.subr.mxu0 0.0
        %510 = vmatpush1.msra.mxu0 %v470
        %511 = vmatprep.subr.mxu0 0.0
        %512 = vmatpush1.msra.mxu0 %v469
        %513 = vmatprep.subr.mxu0 0.0
        %514 = vmatpush1.msra.mxu0 %v468
        %515 = vmatprep.subr.mxu0 0.0
        %516 = vmatpush1.msra.mxu0 %v467
        %517 = vmatprep.subr.mxu0 0.0
        %518 = vmatpush1.msra.mxu0 %v466
        %519 = vmatprep.subr.mxu0 0.0
        %520 = vmatpush1.msra.mxu0 %v465
        %521 = vmatprep.subr.mxu0 0.0
        %522 = vmatpush1.msra.mxu0 %v464
        %523 = vmatprep.subr.mxu0 0.0
        %524 = vmatpush1.msra.mxu0 %v463
        %525 = vmatprep.subr.mxu0 0.0
        %526 = vmatpush1.msra.mxu0 %v462
        %527 = vmatprep.subr.mxu0 0.0
        %528 = vmatpush2.msra.mxu0 %v493
        %529 = vmatprep.subr.mxu0 0.0
        %530 = vmatpush2.msra.mxu0 %v492
        %531 = vmatprep.subr.mxu0 0.0
        %532 = vmatpush2.msra.mxu0 %v491
        %533 = vmatprep.subr.mxu0 0.0
        %534 = vmatpush2.msra.mxu0 %v490
        %535 = vmatprep.subr.mxu0 0.0
        %536 = vmatpush2.msra.mxu0 %v489
        %537 = vmatprep.subr.mxu0 0.0
        %538 = vmatpush2.msra.mxu0 %v488
        %539 = vmatprep.subr.mxu0 0.0
        %540 = vmatpush2.msra.mxu0 %v487
        %541 = vmatprep.subr.mxu0 0.0
        %542 = vmatpush2.msra.mxu0 %v486
        %543 = vmatprep.subr.mxu0 0.0
        %544 = vmatpush2.msra.mxu0 %v485
        %545 = vmatprep.subr.mxu0 0.0
        %546 = vmatpush2.msra.mxu0 %v484
        %547 = vmatprep.subr.mxu0 0.0
        %548 = vmatpush2.msra.mxu0 %v483
        %549 = vmatprep.subr.mxu0 0.0
        %550 = vmatpush2.msra.mxu0 %v482
        %551 = vmatprep.subr.mxu0 0.0
        %552 = vmatpush2.msra.mxu0 %v481
        %553 = vmatprep.subr.mxu0 0.0
        %554 = vmatpush2.msra.mxu0 %v480
        %555 = vmatprep.subr.mxu0 0.0
        %556 = vmatpush2.msra.mxu0 %v479
        %557 = vmatprep.subr.mxu0 0.0
        %558 = vmatpush2.msra.mxu0 %v478
        %559 = vmatprep.mubr.f32.mxu0 %v461
        %560 = vmatmul.mubr.f32.gmra.mxu0 %v460
        %v561 = vpop.f32.mrf.mxu0
        %v562 = vadd.f32 %v494, %v561
        %v563 = vpop.f32.mrf.mxu0
        %564 = vdwg.mxu0
        %v565 = vadd.f32 %v348, %v562
        %v566 = vsel %vm257, %v565, 0.0
        %567 = vadd.xlane.f32.xlu0 %v566
        %v568 = vpop.xlane.xlu0 %567
        %v569 = vmul.f32 %v568, %v336
        %v570 = vsub.f32 %v565, %v569
        %v571 = vmul.f32 %v570, %v570
        %v572 = vsel %vm257, %v571, 0.0
        %573 = vadd.xlane.f32.xlu0 %v572
        %v574 = vpop.xlane.xlu0 %573
        %v575 = vmul.f32 %v574, %v336
        %v576 = vadd.f32 %v575, 1e-05
        %v577 = vrsqrt.pop %v576
        %v578 = vmul.f32 %v570, %v577
        %s579 = scalar_lea.vmem %s1, 64
        %v580 = vld [vmem:[%s579] sm:$0xff]
        %v581 = vld [vmem:[%s579 + $0x8] sm:$0xff]
        %v582 = vld [vmem:[%s579 + $0x10] sm:$0xff]
        %v583 = vld [vmem:[%s579 + $0x18] sm:$0xff]
        %v584 = vld [vmem:[%s579 + $0x20] sm:$0xff]
        %v585 = vld [vmem:[%s579 + $0x28] sm:$0xff]
        %v586 = vld [vmem:[%s579 + $0x30] sm:$0xff]
        %v587 = vld [vmem:[%s579 + $0x38] sm:$0xff]
        %v588 = vld [vmem:[%s5 + $0x5] ss:$0 sm:$0xff]
        %v590 = vsel %vm257, %v578, 0
        %592 = vmatprep.subr.mxu0 0.0
        %593 = vmatpush1.msra.mxu0 0.0
        %594 = vmatprep.subr.mxu0 0.0
        %595 = vmatpush1.msra.mxu0 0.0
        %596 = vmatprep.subr.mxu0 0.0
        %597 = vmatpush1.msra.mxu0 0.0
        %598 = vmatprep.subr.mxu0 0.0
        %599 = vmatpush1.msra.mxu0 0.0
        %600 = vmatprep.subr.mxu0 0.0
        %601 = vmatpush1.msra.mxu0 0.0
        %602 = vmatprep.subr.mxu0 0.0
        %603 = vmatpush1.msra.mxu0 0.0
        %604 = vmatprep.subr.mxu0 0.0
        %605 = vmatpush1.msra.mxu0 0.0
        %606 = vmatprep.subr.mxu0 0.0
        %607 = vmatpush1.msra.mxu0 0.0
        %608 = vmatprep.subr.mxu0 0.0
        %609 = vmatpush1.msra.mxu0 %v587
        %610 = vmatprep.subr.mxu0 0.0
        %611 = vmatpush1.msra.mxu0 %v586
        %612 = vmatprep.subr.mxu0 0.0
        %613 = vmatpush1.msra.mxu0 %v585
        %614 = vmatprep.subr.mxu0 0.0
        %615 = vmatpush1.msra.mxu0 %v584
        %616 = vmatprep.subr.mxu0 0.0
        %617 = vmatpush1.msra.mxu0 %v583
        %618 = vmatprep.subr.mxu0 0.0
        %619 = vmatpush1.msra.mxu0 %v582
        %620 = vmatprep.subr.mxu0 0.0
        %621 = vmatpush1.msra.mxu0 %v581
        %622 = vmatprep.subr.mxu0 0.0
        %623 = vmatpush1.msra.mxu0 %v580
        %624 = vmatprep.subr.mxu0 0.0
        %625 = vmatpush2.msra.mxu0 0.0
        %626 = vmatprep.subr.mxu0 0.0
        %627 = vmatpush2.msra.mxu0 0.0
        %628 = vmatprep.subr.mxu0 0.0
        %629 = vmatpush2.msra.mxu0 0.0
        %630 = vmatprep.subr.mxu0 0.0
        %631 = vmatpush2.msra.mxu0 0.0
        %632 = vmatprep.subr.mxu0 0.0
        %633 = vmatpush2.msra.mxu0 0.0
        %634 = vmatprep.subr.mxu0 0.0
        %635 = vmatpush2.msra.mxu0 0.0
        %636 = vmatprep.subr.mxu0 0.0
        %637 = vmatpush2.msra.mxu0 0.0
        %638 = vmatprep.subr.mxu0 0.0
        %639 = vmatpush2.msra.mxu0 0.0
        %640 = vmatprep.subr.mxu0 0.0
        %641 = vmatpush2.msra.mxu0 0.0
        %642 = vmatprep.subr.mxu0 0.0
        %643 = vmatpush2.msra.mxu0 0.0
        %644 = vmatprep.subr.mxu0 0.0
        %645 = vmatpush2.msra.mxu0 0.0
        %646 = vmatprep.subr.mxu0 0.0
        %647 = vmatpush2.msra.mxu0 0.0
        %648 = vmatprep.subr.mxu0 0.0
        %649 = vmatpush2.msra.mxu0 0.0
        %650 = vmatprep.subr.mxu0 0.0
        %651 = vmatpush2.msra.mxu0 0.0
        %652 = vmatprep.subr.mxu0 0.0
        %653 = vmatpush2.msra.mxu0 0.0
        %654 = vmatprep.subr.mxu0 0.0
        %655 = vmatpush2.msra.mxu0 0.0
        %656 = vmatprep.mubr.f32.mxu0 0.0
        %657 = vmatmul.mubr.f32.gmra.mxu0 %v590
        %v658 = vpop.f32.mrf.mxu0
        %v659 = vadd.f32 %v588, %v658
        %v660 = vpop.f32.mrf.mxu0
        %661 = vdwg.mxu0
        %v662 = vld [vmem:[%s5 + $0x6] ss:$0 sm:$0xff]
        %v663 = vld [vmem:[%s5 + $0x7] ss:$0 sm:$0xff]
        %v664 = vsel %vm257, %v659, 0.0
        %665 = vadd.xlane.f32.xlu0 %v664
        %v666 = vpop.xlane.xlu0 %665
        %v667 = vmul.f32 %v666, %v336
        %v668 = vsub.f32 %v659, %v667
        %v669 = vmul.f32 %v668, %v668
        %v670 = vsel %vm257, %v669, 0.0
        %671 = vadd.xlane.f32.xlu0 %v670
        %v672 = vpop.xlane.xlu0 %671
        %v673 = vmul.f32 %v672, %v336
        %v674 = vadd.f32 %v673, 1e-05
        %v675 = vrsqrt.pop %v674
        %v676 = vmul.f32 %v675, %v662
        %v677 = vmul.f32 %v668, %v676
        %v678 = vadd.f32 %v677, %v663
        %s679 = scalar_lea.vmem %s2, 128
        %v680 = vld [vmem:[%s679] sm:$0xff]
        %v681 = vld [vmem:[%s679 + $0x8] sm:$0xff]
        %v682 = vld [vmem:[%s679 + $0x10] sm:$0xff]
        %v683 = vld [vmem:[%s679 + $0x18] sm:$0xff]
        %v684 = vld [vmem:[%s679 + $0x20] sm:$0xff]
        %v685 = vld [vmem:[%s679 + $0x28] sm:$0xff]
        %v686 = vld [vmem:[%s679 + $0x30] sm:$0xff]
        %v687 = vld [vmem:[%s679 + $0x38] sm:$0xff]
        %v688 = vld [vmem:[%s679 + $0x40] sm:$0xff]
        %v689 = vld [vmem:[%s679 + $0x48] sm:$0xff]
        %v690 = vld [vmem:[%s679 + $0x50] sm:$0xff]
        %v691 = vld [vmem:[%s679 + $0x58] sm:$0xff]
        %v692 = vld [vmem:[%s679 + $0x60] sm:$0xff]
        %v693 = vld [vmem:[%s679 + $0x68] sm:$0xff]
        %v694 = vld [vmem:[%s679 + $0x70] sm:$0xff]
        %v695 = vld [vmem:[%s679 + $0x78] sm:$0xff]
        %s696 = scalar_lea.vmem %s5, 16
        %v697 = vld [vmem:[%s696] ss:$8 sm:$0x3]
        %v699 = vlaneseq
        %v700 = vshrl.u32 %v699, 7
        %v701 = vsub.s32 0, %v700
        %v702 = vrot.slane %v697, %v701
        %v703 = vlaneseq
        %v704 = vshrl.u32 %v703, 7
        %v705 = vsub.s32 1, %v704
        %v706 = vrot.slane %v697, %v705
        %v710 = vsel %vm257, %v678, 0
        %712 = vmatprep.subr.mxu0 0.0
        %713 = vmatpush1.msra.mxu0 0.0
        %714 = vmatprep.subr.mxu0 0.0
        %715 = vmatpush1.msra.mxu0 0.0
        %716 = vmatprep.subr.mxu0 0.0
        %717 = vmatpush1.msra.mxu0 0.0
        %718 = vmatprep.subr.mxu0 0.0
        %719 = vmatpush1.msra.mxu0 0.0
        %720 = vmatprep.subr.mxu0 0.0
        %721 = vmatpush1.msra.mxu0 0.0
        %722 = vmatprep.subr.mxu0 0.0
        %723 = vmatpush1.msra.mxu0 0.0
        %724 = vmatprep.subr.mxu0 0.0
        %725 = vmatpush1.msra.mxu0 0.0
        %726 = vmatprep.subr.mxu0 0.0
        %727 = vmatpush1.msra.mxu0 0.0
        %728 = vmatprep.subr.mxu0 %v695
        %729 = vmatpush1.msra.mxu0 %v694
        %730 = vmatprep.subr.mxu0 %v693
        %731 = vmatpush1.msra.mxu0 %v692
        %732 = vmatprep.subr.mxu0 %v691
        %733 = vmatpush1.msra.mxu0 %v690
        %734 = vmatprep.subr.mxu0 %v689
        %735 = vmatpush1.msra.mxu0 %v688
        %736 = vmatprep.subr.mxu0 %v687
        %737 = vmatpush1.msra.mxu0 %v686
        %738 = vmatprep.subr.mxu0 %v685
        %739 = vmatpush1.msra.mxu0 %v684
        %740 = vmatprep.subr.mxu0 %v683
        %741 = vmatpush1.msra.mxu0 %v682
        %742 = vmatprep.subr.mxu0 %v681
        %743 = vmatpush1.msra.mxu0 %v680
        %744 = vmatprep.subr.mxu0 0.0
        %745 = vmatpush2.msra.mxu0 0.0
        %746 = vmatprep.subr.mxu0 0.0
        %747 = vmatpush2.msra.mxu0 0.0
        %748 = vmatprep.subr.mxu0 0.0
        %749 = vmatpush2.msra.mxu0 0.0
        %750 = vmatprep.subr.mxu0 0.0
        %751 = vmatpush2.msra.mxu0 0.0
        %752 = vmatprep.subr.mxu0 0.0
        %753 = vmatpush2.msra.mxu0 0.0
        %754 = vmatprep.subr.mxu0 0.0
        %755 = vmatpush2.msra.mxu0 0.0
        %756 = vmatprep.subr.mxu0 0.0
        %757 = vmatpush2.msra.mxu0 0.0
        %758 = vmatprep.subr.mxu0 0.0
        %759 = vmatpush2.msra.mxu0 0.0
        %760 = vmatprep.subr.mxu0 0.0
        %761 = vmatpush2.msra.mxu0 0.0
        %762 = vmatprep.subr.mxu0 0.0
        %763 = vmatpush2.msra.mxu0 0.0
        %764 = vmatprep.subr.mxu0 0.0
        %765 = vmatpush2.msra.mxu0 0.0
        %766 = vmatprep.subr.mxu0 0.0
        %767 = vmatpush2.msra.mxu0 0.0
        %768 = vmatprep.subr.mxu0 0.0
        %769 = vmatpush2.msra.mxu0 0.0
        %770 = vmatprep.subr.mxu0 0.0
        %771 = vmatpush2.msra.mxu0 0.0
        %772 = vmatprep.subr.mxu0 0.0
        %773 = vmatpush2.msra.mxu0 0.0
        %774 = vmatprep.subr.mxu0 0.0
        %775 = vmatpush2.msra.mxu0 0.0
        %776 = vmatprep.mubr.f32.mxu0 0.0
        %777 = vmatmul.mubr.f32.gmra.mxu0 %v710
        %v778 = vpop.f32.mrf.mxu0
        %v779 = vadd.f32 %v702, %v778
        %v780 = vpop.f32.mrf.mxu0
        %v781 = vadd.f32 %v706, %v780
        %782 = vdwg.mxu0
        %v783 = vmul.f32 %v779, 0.5
        %v784 = vmul.f32 %v781, 0.5
        %v785 = vmul.f32 %v779, 0.70710677
        %v786 = vmul.f32 %v781, 0.70710677
        %v787 = verf.f32.pop %v785
        %v788 = verf.f32.pop %v786
        %v789 = vadd.f32 %v787, 1.0
        %v790 = vadd.f32 %v788, 1.0
        %v791 = vmul.f32 %v783, %v789
        %v792 = vmul.f32 %v784, %v790
        %s793 = scalar_lea.vmem %s3, 256
        %v794 = vld [vmem:[%s793] sm:$0xff]
        %v795 = vld [vmem:[%s793 + $0x8] sm:$0xff]
        %v796 = vld [vmem:[%s793 + $0x10] sm:$0xff]
        %v797 = vld [vmem:[%s793 + $0x18] sm:$0xff]
        %v798 = vld [vmem:[%s793 + $0x20] sm:$0xff]
        %v799 = vld [vmem:[%s793 + $0x28] sm:$0xff]
        %v800 = vld [vmem:[%s793 + $0x30] sm:$0xff]
        %v801 = vld [vmem:[%s793 + $0x38] sm:$0xff]
        %v802 = vld [vmem:[%s793 + $0x40] sm:$0xff]
        %v803 = vld [vmem:[%s793 + $0x48] sm:$0xff]
        %v804 = vld [vmem:[%s793 + $0x50] sm:$0xff]
        %v805 = vld [vmem:[%s793 + $0x58] sm:$0xff]
        %v806 = vld [vmem:[%s793 + $0x60] sm:$0xff]
        %v807 = vld [vmem:[%s793 + $0x68] sm:$0xff]
        %v808 = vld [vmem:[%s793 + $0x70] sm:$0xff]
        %v809 = vld [vmem:[%s793 + $0x78] sm:$0xff]
        %v810 = vld [vmem:[%s793 + $0x80] sm:$0xff]
        %v811 = vld [vmem:[%s793 + $0x88] sm:$0xff]
        %v812 = vld [vmem:[%s793 + $0x90] sm:$0xff]
        %v813 = vld [vmem:[%s793 + $0x98] sm:$0xff]
        %v814 = vld [vmem:[%s793 + $0xa0] sm:$0xff]
        %v815 = vld [vmem:[%s793 + $0xa8] sm:$0xff]
        %v816 = vld [vmem:[%s793 + $0xb0] sm:$0xff]
        %v817 = vld [vmem:[%s793 + $0xb8] sm:$0xff]
        %v818 = vld [vmem:[%s793 + $0xc0] sm:$0xff]
        %v819 = vld [vmem:[%s793 + $0xc8] sm:$0xff]
        %v820 = vld [vmem:[%s793 + $0xd0] sm:$0xff]
        %v821 = vld [vmem:[%s793 + $0xd8] sm:$0xff]
        %v822 = vld [vmem:[%s793 + $0xe0] sm:$0xff]
        %v823 = vld [vmem:[%s793 + $0xe8] sm:$0xff]
        %v824 = vld [vmem:[%s793 + $0xf0] sm:$0xff]
        %v825 = vld [vmem:[%s793 + $0xf8] sm:$0xff]
        %v826 = vld [vmem:[%s5 + $0x11] ss:$0 sm:$0xff]
        %827 = vmatprep.subr.mxu0 0.0
        %828 = vmatpush1.msra.mxu0 %v809
        %829 = vmatprep.subr.mxu0 0.0
        %830 = vmatpush1.msra.mxu0 %v808
        %831 = vmatprep.subr.mxu0 0.0
        %832 = vmatpush1.msra.mxu0 %v807
        %833 = vmatprep.subr.mxu0 0.0
        %834 = vmatpush1.msra.mxu0 %v806
        %835 = vmatprep.subr.mxu0 0.0
        %836 = vmatpush1.msra.mxu0 %v805
        %837 = vmatprep.subr.mxu0 0.0
        %838 = vmatpush1.msra.mxu0 %v804
        %839 = vmatprep.subr.mxu0 0.0
        %840 = vmatpush1.msra.mxu0 %v803
        %841 = vmatprep.subr.mxu0 0.0
        %842 = vmatpush1.msra.mxu0 %v802
        %843 = vmatprep.subr.mxu0 0.0
        %844 = vmatpush1.msra.mxu0 %v801
        %845 = vmatprep.subr.mxu0 0.0
        %846 = vmatpush1.msra.mxu0 %v800
        %847 = vmatprep.subr.mxu0 0.0
        %848 = vmatpush1.msra.mxu0 %v799
        %849 = vmatprep.subr.mxu0 0.0
        %850 = vmatpush1.msra.mxu0 %v798
        %851 = vmatprep.subr.mxu0 0.0
        %852 = vmatpush1.msra.mxu0 %v797
        %853 = vmatprep.subr.mxu0 0.0
        %854 = vmatpush1.msra.mxu0 %v796
        %855 = vmatprep.subr.mxu0 0.0
        %856 = vmatpush1.msra.mxu0 %v795
        %857 = vmatprep.subr.mxu0 0.0
        %858 = vmatpush1.msra.mxu0 %v794
        %859 = vmatprep.subr.mxu0 0.0
        %860 = vmatpush2.msra.mxu0 %v825
        %861 = vmatprep.subr.mxu0 0.0
        %862 = vmatpush2.msra.mxu0 %v824
        %863 = vmatprep.subr.mxu0 0.0
        %864 = vmatpush2.msra.mxu0 %v823
        %865 = vmatprep.subr.mxu0 0.0
        %866 = vmatpush2.msra.mxu0 %v822
        %867 = vmatprep.subr.mxu0 0.0
        %868 = vmatpush2.msra.mxu0 %v821
        %869 = vmatprep.subr.mxu0 0.0
        %870 = vmatpush2.msra.mxu0 %v820
        %871 = vmatprep.subr.mxu0 0.0
        %872 = vmatpush2.msra.mxu0 %v819
        %873 = vmatprep.subr.mxu0 0.0
        %874 = vmatpush2.msra.mxu0 %v818
        %875 = vmatprep.subr.mxu0 0.0
        %876 = vmatpush2.msra.mxu0 %v817
        %877 = vmatprep.subr.mxu0 0.0
        %878 = vmatpush2.msra.mxu0 %v816
        %879 = vmatprep.subr.mxu0 0.0
        %880 = vmatpush2.msra.mxu0 %v815
        %881 = vmatprep.subr.mxu0 0.0
        %882 = vmatpush2.msra.mxu0 %v814
        %883 = vmatprep.subr.mxu0 0.0
        %884 = vmatpush2.msra.mxu0 %v813
        %885 = vmatprep.subr.mxu0 0.0
        %886 = vmatpush2.msra.mxu0 %v812
        %887 = vmatprep.subr.mxu0 0.0
        %888 = vmatpush2.msra.mxu0 %v811
        %889 = vmatprep.subr.mxu0 0.0
        %890 = vmatpush2.msra.mxu0 %v810
        %891 = vmatprep.mubr.f32.mxu0 %v792
        %892 = vmatmul.mubr.f32.gmra.mxu0 %v791
        %v893 = vpop.f32.mrf.mxu0
        %v894 = vadd.f32 %v826, %v893
        %v895 = vpop.f32.mrf.mxu0
        %896 = vdwg.mxu0
        %v897 = vadd.f32 %v678, %v894
        %v898 = vld [vmem:[%s5 + $0x12] ss:$0 sm:$0xff]
        %v899 = vld [vmem:[%s5 + $0x13] ss:$0 sm:$0xff]
        %v900 = vsel %vm257, %v897, 0.0
        %901 = vadd.xlane.f32.xlu0 %v900
        %v902 = vpop.xlane.xlu0 %901
        %v903 = vmul.f32 %v902, %v336
        %v904 = vsub.f32 %v897, %v903
        %v905 = vmul.f32 %v904, %v904
        %v906 = vsel %vm257, %v905, 0.0
        %907 = vadd.xlane.f32.xlu0 %v906
        %v908 = vpop.xlane.xlu0 %907
        %v909 = vmul.f32 %v908, %v336
        %v910 = vadd.f32 %v909, 1e-05
        %v911 = vrsqrt.pop %v910
        %v912 = vmul.f32 %v911, %v898
        %v913 = vmul.f32 %v904, %v912
        %v914 = vadd.f32 %v913, %v899
        %v915 = vsel %vm257, %v914, 0.0
        %916 = vadd.xlane.f32.xlu0 %v915
        %v917 = vpop.xlane.xlu0 %916
        %v918 = vmul.f32 %v917, %v336
        %v919 = vsub.f32 %v914, %v918
        %v920 = vmul.f32 %v919, %v919
        %v921 = vsel %vm257, %v920, 0.0
        %922 = vadd.xlane.f32.xlu0 %v921
        %v923 = vpop.xlane.xlu0 %922
        %v924 = vmul.f32 %v923, %v336
        %v925 = vadd.f32 %v924, 1e-05
        %v926 = vrsqrt.pop %v925
        %v927 = vmul.f32 %v919, %v926
        %v928 = vld [vmem:[%s4] sm:$0xff]
        %v929 = vld [vmem:[%s4 + $0x8] sm:$0xff]
        %v930 = vld [vmem:[%s4 + $0x10] sm:$0xff]
        %v931 = vld [vmem:[%s4 + $0x18] sm:$0xff]
        %v932 = vld [vmem:[%s4 + $0x20] sm:$0xff]
        %v933 = vld [vmem:[%s4 + $0x28] sm:$0xff]
        %v934 = vld [vmem:[%s4 + $0x30] sm:$0xff]
        %v935 = vld [vmem:[%s4 + $0x38] sm:$0xff]
        %v936 = vld [vmem:[%s5 + $0x14] ss:$0 sm:$0xff]
        %v938 = vsel %vm257, %v927, 0
        %940 = vmatprep.subr.mxu0 0.0
        %941 = vmatpush1.msra.mxu0 0.0
        %942 = vmatprep.subr.mxu0 0.0
        %943 = vmatpush1.msra.mxu0 0.0
        %944 = vmatprep.subr.mxu0 0.0
        %945 = vmatpush1.msra.mxu0 0.0
        %946 = vmatprep.subr.mxu0 0.0
        %947 = vmatpush1.msra.mxu0 0.0
        %948 = vmatprep.subr.mxu0 0.0
        %949 = vmatpush1.msra.mxu0 0.0
        %950 = vmatprep.subr.mxu0 0.0
        %951 = vmatpush1.msra.mxu0 0.0
        %952 = vmatprep.subr.mxu0 0.0
        %953 = vmatpush1.msra.mxu0 0.0
        %954 = vmatprep.subr.mxu0 0.0
        %955 = vmatpush1.msra.mxu0 0.0
        %956 = vmatprep.subr.mxu0 0.0
        %957 = vmatpush1.msra.mxu0 %v935
        %958 = vmatprep.subr.mxu0 0.0
        %959 = vmatpush1.msra.mxu0 %v934
        %960 = vmatprep.subr.mxu0 0.0
        %961 = vmatpush1.msra.mxu0 %v933
        %962 = vmatprep.subr.mxu0 0.0
        %963 = vmatpush1.msra.mxu0 %v932
        %964 = vmatprep.subr.mxu0 0.0
        %965 = vmatpush1.msra.mxu0 %v931
        %966 = vmatprep.subr.mxu0 0.0
        %967 = vmatpush1.msra.mxu0 %v930
        %968 = vmatprep.subr.mxu0 0.0
        %969 = vmatpush1.msra.mxu0 %v929
        %970 = vmatprep.subr.mxu0 0.0
        %971 = vmatpush1.msra.mxu0 %v928
        %972 = vmatprep.subr.mxu0 0.0
        %973 = vmatpush2.msra.mxu0 0.0
        %974 = vmatprep.subr.mxu0 0.0
        %975 = vmatpush2.msra.mxu0 0.0
        %976 = vmatprep.subr.mxu0 0.0
        %977 = vmatpush2.msra.mxu0 0.0
        %978 = vmatprep.subr.mxu0 0.0
        %979 = vmatpush2.msra.mxu0 0.0
        %980 = vmatprep.subr.mxu0 0.0
        %981 = vmatpush2.msra.mxu0 0.0
        %982 = vmatprep.subr.mxu0 0.0
        %983 = vmatpush2.msra.mxu0 0.0
        %984 = vmatprep.subr.mxu0 0.0
        %985 = vmatpush2.msra.mxu0 0.0
        %986 = vmatprep.subr.mxu0 0.0
        %987 = vmatpush2.msra.mxu0 0.0
        %988 = vmatprep.subr.mxu0 0.0
        %989 = vmatpush2.msra.mxu0 0.0
        %990 = vmatprep.subr.mxu0 0.0
        %991 = vmatpush2.msra.mxu0 0.0
        %992 = vmatprep.subr.mxu0 0.0
        %993 = vmatpush2.msra.mxu0 0.0
        %994 = vmatprep.subr.mxu0 0.0
        %995 = vmatpush2.msra.mxu0 0.0
        %996 = vmatprep.subr.mxu0 0.0
        %997 = vmatpush2.msra.mxu0 0.0
        %998 = vmatprep.subr.mxu0 0.0
        %999 = vmatpush2.msra.mxu0 0.0
        %1000 = vmatprep.subr.mxu0 0.0
        %1001 = vmatpush2.msra.mxu0 0.0
        %1002 = vmatprep.subr.mxu0 0.0
        %1003 = vmatpush2.msra.mxu0 0.0
        %1004 = vmatprep.mubr.f32.mxu0 0.0
        %1005 = vmatmul.mubr.f32.gmra.mxu0 %v938
        %v1006 = vpop.f32.mrf.mxu0
        %v1007 = vadd.f32 %v936, %v1006
        %v1008 = vpop.f32.mrf.mxu0
        %1009 = vdwg.mxu0
        %1010 = vst [vmem:[%s242] sm:$0xff] %v1007
        %s1011 = sand.u32 %s159, 1
        %s1012 = scalar_lea.sflag [#allocation3], %s1011
        %s1013 = sand.u32 %s159, 1
        %s1014 = smul.addr %s1013, 8
        %s1015 = scalar_lea.vmem [#allocation2], %s1014
        // Predicated region
        $region45: #{tpu_custom_call.1} parent=43 // pred_check
          %p1016 = pneg %p169
        $region46: #{tpu_custom_call.1} parent=43 // pred_check_branch
          %1018 = sbr.rel (%p1016) target = $region48
        $region47: #{tpu_custom_call.1} parent=43 // pred_region
          %s1020 = ssub.s32 128, 128
          %1021 = vsyncadd %s1012, %s1020
          %s1022 = smul.addr %s20, 128
          %s1023 = scalar_lea.hbm %s6, %s1022
          %s1025 = sshll.u32 %s1015, 4
          %s1026 = int_to_ptr.vmem [resolvable:$true] %s1025
          %1028 = dma.vmem_to_hbm [thread:$0]  %s1026, 128, %s1023, %s1012
        $region48: #{tpu_custom_call.1} parent=43 // pred_fallthru
          _
      $region44: #{tpu_custom_call.1} parent=5 // pred_fallthru
        _
      %p1029 = scmp.le.s32.totalorder 2, %s15
      // Predicated region
      $region49: #{tpu_custom_call.1} parent=5 // pred_check
        %p1030 = pneg %p1029
      $region50: #{tpu_custom_call.1} parent=5 // pred_check_branch
        %1032 = sbr.rel (%p1030) target = $region52
      $region51: #{tpu_custom_call.1} parent=5 // pred_region
        %s1033 = ssub.s32 %s15, 2
        // Predicated region
        $region53: #{tpu_custom_call.1} parent=51 // pred_check
          %p1034 = pneg %p175
        $region54: #{tpu_custom_call.1} parent=51 // pred_check_branch
          %1036 = sbr.rel (%p1034) target = $region56
        $region55: #{tpu_custom_call.1} parent=51 // pred_region
          %s1037 = sand.u32 %s160, 1
          %s1038 = scalar_lea.sflag [#allocation3], %s1037
          %s1039 = sand.u32 %s160, 1
          %s1040 = smul.addr %s1039, 8
          %s1041 = scalar_lea.vmem [#allocation2], %s1040
          %1042 = dma.done %s1038, 128
        $region56: #{tpu_custom_call.1} parent=51 // pred_fallthru
          _
      $region52: #{tpu_custom_call.1} parent=5 // pred_fallthru
        _
    $region6: #{tpu_custom_call.1} parent=1 // loop_footer
      %s19 = sadd.s32 1, %s15
    $region7: #{tpu_custom_call.1} parent=1 // loop_footer_branch
      %14 = sbr.rel target = $region3
    $region8: #{tpu_custom_call.1} parent=1 // loop_exit
      _
    %1043 = vsyncpa [#allocation3], 1
    %s1044 = scalar_lea.sflag [#allocation3], 1
    %1045 = vsyncpa %s1044, 1

</llo_original>
